<compile_context>
chip_gen: v7x
topology: tpu7x:2x2x1
jax: 0.10.0
libtpu: 0.0.40
codegen_flags: <defaults>
</compile_context>

<pallas_src>
import functools
import math

import jax
import jax.numpy as jnp
from jax.experimental import pallas as pl
from jax.experimental.pallas import tpu as pltpu

_BN_EPS = 1e-5


@functools.lru_cache(maxsize=1)
def _vmem_limit_bytes():
    try:
        cap = int(pltpu.get_tpu_info().vmem_capacity_bytes)
    except Exception:
        cap = 64 * 1024 * 1024
    # ~80% of physical per-core VMEM, capped at 100 MiB:
    # v5e/v6e (128 MiB) -> ~100 MiB, v7x (64 MiB per TC) -> ~51 MiB.
    return int(min(cap * 0.8, 100 * 1024 * 1024))


def _compiler_params():
    return pltpu.CompilerParams(dimension_semantics=("parallel",),
                                vmem_limit_bytes=_vmem_limit_bytes())


# --------------------------------------------------------------------------
# Pallas kernels
# --------------------------------------------------------------------------
def _conv_tap_kernel(x_ref, w_ref, st_ref, o_ref, *, taps, lout, relu):
    """out = maybe_relu((sum_t slice_t(x) @ W_t) * scale + shift).

    x_ref : (1, P, Lin, Cin)   phase-decomposed, flattened input (bf16)
    w_ref : (T, Cin, Cout)     per-tap weights (bf16)
    st_ref: (2, Cout)          packed [scale; shift] (f32)
    o_ref : (1, Lout, Cout)
    Implicit im2col: every tap is a contiguous VMEM row-slice + one MXU matmul
    with f32 accumulation; patches never touch HBM.
    """
    acc = None
    for t, p, start in taps:
        a = x_ref[0, p, pl.ds(start, lout), :]
        d = jnp.dot(a, w_ref[t], preferred_element_type=jnp.float32)
        acc = d if acc is None else acc + d
    y = acc * st_ref[0:1, :] + st_ref[1:2, :]
    if relu:
        y = jnp.maximum(y, 0.0)
    o_ref[0] = y.astype(o_ref.dtype)


def _pool_tap_kernel(x_ref, o_ref, *, taps, lout):
    """Window max over shifted VMEM slices (VPU only)."""
    acc = None
    for _, p, start in taps:
        a = x_ref[0, p, pl.ds(start, lout), :]
        acc = a if acc is None else jnp.maximum(acc, a)
    o_ref[0] = acc


def _deconv_tap_kernel(x_ref, w_ref, sh_ref, o_ref, acc_ref, *, taps, lslab,
                       relu):
    """Fused ConvTranspose2d: per-tap matmul + col2im into an f32 VMEM
    phase-plane accumulator; shift/ReLU/cast fused into the single store.

    x_ref : (1, Lx, Cin)     flattened input, width zero-padded to B (bf16)
    w_ref : (T, Cin, Cout)   per-tap weights with the per-Cout scale folded in
    sh_ref: (1, Cout)        shift (f32)
    o_ref : (1, P, La, Cout) phase-plane output
    acc_ref: (P, La, Cout)   f32 scratch
    """
    acc_ref[...] = jnp.zeros_like(acc_ref)
    xv = x_ref[0]
    for t, ph, off in taps:
        z = jnp.dot(xv, w_ref[t], preferred_element_type=jnp.float32)
        acc_ref[ph, pl.ds(off, lslab), :] += z
    y = acc_ref[...] + sh_ref[0:1, :]
    if relu:
        y = jnp.maximum(y, 0.0)
    o_ref[0] = y.astype(o_ref.dtype)


# --------------------------------------------------------------------------
# Wrapper-side geometry helpers
# --------------------------------------------------------------------------
def _pad_to(x, axis, before, target):
    """Pad `before` zeros in front, then pad/crop the tail to reach `target`."""
    size = x.shape[axis]
    after = target - before - size
    widths = [(0, 0)] * x.ndim
    if after >= 0:
        widths[axis] = (before, after)
        return jnp.pad(x, widths)
    widths[axis] = (before, 0)
    x = jnp.pad(x, widths)
    idx = [slice(None)] * x.ndim
    idx[axis] = slice(0, target)
    return x[tuple(idx)]


def _phase_flatten(x, kh, kw, stride, pad):
    """Pad + phase-decompose + flatten NHWC x so a (kh,kw,stride,pad) window op
    becomes, per tap, a contiguous row-slice of one phase plane.

    Returns (xf, taps, oh, ow, wph, lout):
      xf   : (N, stride*stride, hph*wph, C)
      taps : tuple of (tap_index, phase_index, row_offset)
      output flat rows r = oh_idx*wph + ow_idx; cols >= ow are discarded.
    """
    n, h, w, c = x.shape
    s = stride
    oh = (h + 2 * pad - kh) // s + 1
    ow = (w + 2 * pad - kw) // s + 1
    qi = (kh - 1) // s
    qj = (kw - 1) // s
    wph = ow + qj
    hph = oh + qi + (1 if qj > 0 else 0)
    xp = _pad_to(x, 1, pad, s * hph)
    xp = _pad_to(xp, 2, pad, s * wph)
    if s == 1:
        xf = xp.reshape(n, 1, hph * wph, c)
    else:
        xf = xp.reshape(n, hph, s, wph, s, c)
        xf = xf.transpose(0, 2, 4, 1, 3, 5).reshape(n, s * s, hph * wph, c)
    taps = tuple((i * kw + j, (i % s) * s + (j % s), (i // s) * wph + (j // s))
                 for i in range(kh) for j in range(kw))
    return xf, taps, oh, ow, wph, oh * wph


# --------------------------------------------------------------------------
# Conv / MaxPool / ConvTranspose wrappers
# --------------------------------------------------------------------------
def conv2d(x, w_hwio, *, stride, pad, scale, shift, relu=False,
           out_dtype=jnp.bfloat16):
    """2-D convolution (NHWC, HWIO weights) with fused affine (+ReLU)."""
    kh, kw, ci, co = w_hwio.shape
    if kh == 1 and kw == 1 and stride > 1 and pad == 0:
        # 1x1 strided conv == subsample then 1x1 conv (no phase planes needed).
        x = x[:, ::stride, ::stride, :]
        stride = 1
    n = x.shape[0]
    xf, taps, oh, ow, wph, lout = _phase_flatten(
        x.astype(jnp.bfloat16), kh, kw, stride, pad)
    wf = w_hwio.reshape(kh * kw, ci, co).astype(jnp.bfloat16)
    st = jnp.stack([scale, shift]).astype(jnp.float32)
    p2 = stride * stride
    lin = xf.shape[2]

    out = pl.pallas_call(
        functools.partial(_conv_tap_kernel, taps=taps, lout=lout, relu=relu),
        out_shape=jax.ShapeDtypeStruct((n, lout, co), out_dtype),
        grid_spec=pltpu.PrefetchScalarGridSpec(
            num_scalar_prefetch=0,
            grid=(n,),
            in_specs=[
                pl.BlockSpec((1, p2, lin, ci), lambda b: (b, 0, 0, 0)),
                pl.BlockSpec((kh * kw, ci, co), lambda b: (0, 0, 0)),
                pl.BlockSpec((2, co), lambda b: (0, 0)),
            ],
            out_specs=pl.BlockSpec((1, lout, co), lambda b: (b, 0, 0))),
        compiler_params=_compiler_params(),
    )(xf, wf, st)
    return out.reshape(n, oh, wph, co)[:, :, :ow, :]


def maxpool2d(x, *, k=3, stride=2, pad=1):
    """3x3/s2 max-pool; relies on x >= 0 (post-ReLU) so zero pad == -inf pad."""
    n, _, _, c = x.shape
    xf, taps, oh, ow, wph, lout = _phase_flatten(x, k, k, stride, pad)
    p2 = stride * stride
    lin = xf.shape[2]
    out = pl.pallas_call(
        functools.partial(_pool_tap_kernel, taps=taps, lout=lout),
        out_shape=jax.ShapeDtypeStruct((n, lout, c), x.dtype),
        grid_spec=pltpu.PrefetchScalarGridSpec(
            num_scalar_prefetch=0,
            grid=(n,),
            in_specs=[pl.BlockSpec((1, p2, lin, c), lambda b: (b, 0, 0, 0))],
            out_specs=pl.BlockSpec((1, lout, c), lambda b: (b, 0, 0))),
        compiler_params=_compiler_params(),
    )(xf)
    return out.reshape(n, oh, wph, c)[:, :, :ow, :]


def conv_transpose2d(x, w_iohw, *, stride, pad, scale, shift, relu=False,
                     out_dtype=jnp.bfloat16):
    """ConvTranspose2d (PyTorch weight layout (Cin, Cout, kH, kW)), fused."""
    n, ih, iw, ci = x.shape
    ci2, co, kh, kw = w_iohw.shape
    assert ci == ci2
    s = stride
    oh = (ih - 1) * s - 2 * pad + kh
    ow = (iw - 1) * s - 2 * pad + kw
    u_min, u_max = (0 - pad) // s, (kh - 1 - pad) // s
    v_min, v_max = (0 - pad) // s, (kw - 1 - pad) // s
    uspan, vspan = u_max - u_min, v_max - v_min
    a_rows = ih + uspan + (1 if vspan > 0 else 0)
    b_cols = iw + vspan
    lslab = ih * b_cols
    lacc = a_rows * b_cols
    p2 = s * s

    xb = jnp.pad(x.astype(jnp.bfloat16),
                 ((0, 0), (0, 0), (0, b_cols - iw), (0, 0)))
    xf = xb.reshape(n, lslab, ci)
    wf = jnp.transpose(w_iohw, (2, 3, 0, 1)).reshape(kh * kw, ci, co)
    wf = (wf * scale.astype(jnp.float32)[None, None, :]).astype(jnp.bfloat16)
    sh = shift.astype(jnp.float32).reshape(1, co)

    taps = tuple(
        (i * kw + j,
         ((i - pad) % s) * s + ((j - pad) % s),
         ((i - pad) // s - u_min) * b_cols + ((j - pad) // s - v_min))
        for i in range(kh) for j in range(kw))

    out = pl.pallas_call(
        functools.partial(_deconv_tap_kernel, taps=taps, lslab=lslab,
                          relu=relu),
        out_shape=jax.ShapeDtypeStruct((n, p2, lacc, co), out_dtype),
        grid_spec=pltpu.PrefetchScalarGridSpec(
            num_scalar_prefetch=0,
            grid=(n,),
            in_specs=[
                pl.BlockSpec((1, lslab, ci), lambda b: (b, 0, 0)),
                pl.BlockSpec((kh * kw, ci, co), lambda b: (0, 0, 0)),
                pl.BlockSpec((1, co), lambda b: (0, 0)),
            ],
            out_specs=pl.BlockSpec((1, p2, lacc, co), lambda b: (b, 0, 0, 0)),
            scratch_shapes=[pltpu.VMEM((p2, lacc, co), jnp.float32)]),
        compiler_params=_compiler_params(),
    )(xf, wf, sh)

    # depth-to-space of the s*s phase planes + crop to the true output window.
    o = out.reshape(n, s, s, a_rows, b_cols, co)
    o = o.transpose(0, 3, 1, 4, 2, 5).reshape(n, a_rows * s, b_cols * s, co)
    r0, c0 = -s * u_min, -s * v_min
    return o[:, r0:r0 + oh, c0:c0 + ow, :]


# --------------------------------------------------------------------------
# Parameter initialization (deterministic, PyTorch-equivalent shapes)
# --------------------------------------------------------------------------
class _ParamGen:
    def __init__(self, seed=0):
        self._key = jax.random.PRNGKey(seed)

    def _next(self):
        self._key, sub = jax.random.split(self._key)
        return sub

    def conv(self, co, ci, kh, kw):
        std = math.sqrt(2.0 / (ci * kh * kw))
        w = std * jax.random.normal(self._next(), (co, ci, kh, kw), jnp.float32)
        return jnp.transpose(w, (2, 3, 1, 0))          # HWIO

    def conv_t(self, ci, co, kh, kw):
        std = math.sqrt(2.0 / (ci * kh * kw))
        return std * jax.random.normal(self._next(), (ci, co, kh, kw),
                                       jnp.float32)

    def bias(self, c):
        return 0.05 * jax.random.normal(self._next(), (c,), jnp.float32)

    def bn(self, c):
        gamma = 1.0 + 0.1 * jax.random.normal(self._next(), (c,), jnp.float32)
        beta = 0.1 * jax.random.normal(self._next(), (c,), jnp.float32)
        mean = 0.1 * jax.random.normal(self._next(), (c,), jnp.float32)
        var = jnp.ones((c,), jnp.float32)
        return (gamma, beta, mean, var)


def _bn_fold(bn, bias=None):
    gamma, beta, mean, var = bn
    scale = gamma / jnp.sqrt(var + _BN_EPS)
    shift = beta - mean * scale
    if bias is not None:
        shift = shift + scale * bias
    return scale, shift


def _plain_affine(co, bias=None):
    scale = jnp.ones((co,), jnp.float32)
    shift = jnp.zeros((co,), jnp.float32) if bias is None else bias
    return scale, shift


def init_params(seed=0):
    g = _ParamGen(seed)
    p = {}
    p["conv1_w"] = g.conv(64, 3, 7, 7)
    p["bn1"] = g.bn(64)

    def block(cin, cout, stride):
        b = {"conv1_w": g.conv(cout, cin, 3, 3), "bn1": g.bn(cout),
             "conv2_w": g.conv(cout, cout, 3, 3), "bn2": g.bn(cout)}
        if stride != 1 or cin != cout:
            b["down_w"] = g.conv(cout, cin, 1, 1)
            b["down_bn"] = g.bn(cout)
        return b

    p["layer1"] = [block(64, 64, 1), block(64, 64, 1)]
    p["layer2"] = [block(64, 128, 2), block(128, 128, 1)]
    p["layer3"] = [block(128, 256, 2), block(256, 256, 1)]
    p["layer4"] = [block(256, 512, 2), block(512, 512, 1)]

    p["dec_conv_w"] = g.conv(100, 512, 3, 3); p["dec_conv_b"] = g.bias(100)
    p["ct1_w"] = g.conv_t(100, 70, 7, 7); p["ct1_b"] = g.bias(70); p["ct1_bn"] = g.bn(70)
    p["ct2_w"] = g.conv_t(70, 50, 8, 8); p["ct2_b"] = g.bias(50); p["ct2_bn"] = g.bn(50)
    p["ct3_w"] = g.conv_t(50, 24, 7, 7); p["ct3_b"] = g.bias(24)
    return p


# --------------------------------------------------------------------------
# Forward pass
# --------------------------------------------------------------------------
def _basic_block(x, b, stride):
    s1, t1 = _bn_fold(b["bn1"])
    out = conv2d(x, b["conv1_w"], stride=stride, pad=1, scale=s1, shift=t1,
                 relu=True)
    s2, t2 = _bn_fold(b["bn2"])
    out = conv2d(out, b["conv2_w"], stride=1, pad=1, scale=s2, shift=t2,
                 relu=False)
    if "down_w" in b:
        sd, td = _bn_fold(b["down_bn"])
        identity = conv2d(x, b["down_w"], stride=stride, pad=0,
                          scale=sd, shift=td, relu=False)
    else:
        identity = x
    # TODO(synk): residual add + ReLU kept as an XLA elementwise pass.
    return jnp.maximum(out + identity, 0.0)


@jax.jit
def segmentation_nn_forward(params, x_nchw):
    x = jnp.transpose(x_nchw, (0, 2, 3, 1)).astype(jnp.bfloat16)  # NCHW->NHWC

    s, t = _bn_fold(params["bn1"])
    x = conv2d(x, params["conv1_w"], stride=2, pad=3, scale=s, shift=t,
               relu=True)
    x = maxpool2d(x)

    for name, stride in (("layer1", 1), ("layer2", 2), ("layer3", 2),
                         ("layer4", 2)):
        blocks = params[name]
        x = _basic_block(x, blocks[0], stride)
        x = _basic_block(x, blocks[1], 1)

    s, t = _plain_affine(100, params["dec_conv_b"])
    x = conv2d(x, params["dec_conv_w"], stride=3, pad=1, scale=s, shift=t,
               relu=True)

    s, t = _bn_fold(params["ct1_bn"], bias=params["ct1_b"])
    x = conv_transpose2d(x, params["ct1_w"], stride=5, pad=1, scale=s, shift=t,
                         relu=True)

    s, t = _bn_fold(params["ct2_bn"], bias=params["ct2_b"])
    x = conv_transpose2d(x, params["ct2_w"], stride=3, pad=1, scale=s, shift=t,
                         relu=False)

    s, t = _plain_affine(24, params["ct3_b"])
    x = conv_transpose2d(x, params["ct3_w"], stride=5, pad=1, scale=s, shift=t,
                         relu=False, out_dtype=jnp.float32)

    return jnp.transpose(x, (0, 3, 1, 2)).astype(jnp.float32)   # NHWC->NCHW


# --------------------------------------------------------------------------
# References for self-checks
# --------------------------------------------------------------------------
def _ref_conv(x, w_hwio, stride, pad):
    xb = x.astype(jnp.bfloat16).astype(jnp.float32)
    wb = w_hwio.astype(jnp.bfloat16).astype(jnp.float32)
    return jax.lax.conv_general_dilated(
        xb, wb, (stride, stride), ((pad, pad), (pad, pad)),
        dimension_numbers=("NHWC", "HWIO", "NHWC"),
        precision=jax.lax.Precision.HIGHEST)


def _ref_maxpool(x, k, stride, pad):
    return jax.lax.reduce_window(
        x, -jnp.inf, jax.lax.max, (1, k, k, 1), (1, stride, stride, 1),
        ((0, 0), (pad, pad), (pad, pad), (0, 0)))


def _ref_conv_transpose(x, w_iohw, *, stride, pad):
    n, ih, iw, ci = x.shape
    _, co, kh, kw = w_iohw.shape
    s = stride
    xb = x.astype(jnp.bfloat16).astype(jnp.float32)
    wb = w_iohw.astype(jnp.bfloat16).astype(jnp.float32)
    xd = jnp.zeros((n, (ih - 1) * s + 1, (iw - 1) * s + 1, ci), jnp.float32)
    xd = xd.at[:, ::s, ::s, :].set(xb)
    p = kh - 1 - pad
    xp = jnp.pad(xd, ((0, 0), (p, p), (p, p), (0, 0)))
    wf = jnp.transpose(jnp.flip(wb, (2, 3)), (2, 3, 0, 1))
    oh = xp.shape[1] - kh + 1
    ow = xp.shape[2] - kw + 1
    out = jnp.zeros((n, oh, ow, co), jnp.float32)
    for i in range(kh):
        for j in range(kw):
            out = out + jnp.einsum("nhwc,co->nhwo",
                                   xp[:, i:i + oh, j:j + ow, :], wf[i, j])
    return out


if __name__ == "__main__":
    key = jax.random.PRNGKey(0)
    k1, k2, k3, k4, k5, k6, k7, k8 = jax.random.split(key, 8)

    # 1) implicit-im2col conv kernel vs XLA conv reference (stride 1 and 2).
    xa = jax.random.normal(k1, (2, 10, 12, 16), jnp.float32)
    wa = 0.2 * jax.random.normal(k2, (3, 3, 16, 32), jnp.float32)
    sc = jnp.linspace(0.5, 1.5, 32).astype(jnp.float32)
    sh = jnp.linspace(-1.0, 1.0, 32).astype(jnp.float32)
    got = conv2d(xa, wa, stride=1, pad=1, scale=sc, shift=sh, relu=True,
                 out_dtype=jnp.float32)
    want = jnp.maximum(_ref_conv(xa, wa, 1, 1) * sc + sh, 0.0)
    assert got.shape == want.shape, (got.shape, want.shape)
    assert jnp.allclose(got, want, atol=2e-2, rtol=2e-2)

    xb = jax.random.normal(k3, (2, 9, 9, 8), jnp.float32)
    wb = 0.2 * jax.random.normal(k4, (3, 3, 8, 16), jnp.float32)
    sc16, sh16 = _plain_affine(16)
    got = conv2d(xb, wb, stride=2, pad=1, scale=sc16, shift=sh16, relu=False,
                 out_dtype=jnp.float32)
    want = _ref_conv(xb, wb, 2, 1)
    assert got.shape == want.shape, (got.shape, want.shape)
    assert jnp.allclose(got, want, atol=2e-2, rtol=2e-2)

    # 2) Pallas max-pool vs reduce_window (exact on identical bf16 inputs).
    xp_ = jnp.maximum(jax.random.normal(k5, (2, 9, 9, 16), jnp.float32), 0.0)
    xp_b = xp_.astype(jnp.bfloat16)
    gotp = maxpool2d(xp_b).astype(jnp.float32)
    wantp = _ref_maxpool(xp_b.astype(jnp.float32), 3, 2, 1)
    assert gotp.shape == wantp.shape, (gotp.shape, wantp.shape)
    assert jnp.allclose(gotp, wantp, atol=1e-6)

    # 3) fused deconv (matmul + col2im + affine) vs zero-dilation reference.
    xt = jax.random.normal(k6, (1, 2, 2, 4), jnp.float32)
    wt = 0.3 * jax.random.normal(k7, (4, 5, 7, 7), jnp.float32)
    sc5 = jnp.linspace(0.8, 1.2, 5).astype(jnp.float32)
    sh5 = jnp.linspace(-0.5, 0.5, 5).astype(jnp.float32)
    got_t = conv_transpose2d(xt, wt, stride=5, pad=1, scale=sc5, shift=sh5,
                             relu=False, out_dtype=jnp.float32)
    want_t = _ref_conv_transpose(xt, wt, stride=5, pad=1) * sc5 + sh5
    assert got_t.shape == want_t.shape, (got_t.shape, want_t.shape)
    assert jnp.allclose(got_t, want_t, atol=5e-2, rtol=5e-2)

    xt2 = jax.random.normal(k8, (1, 3, 3, 6), jnp.float32)
    wt2 = 0.3 * jax.random.normal(k2, (6, 4, 8, 8), jnp.float32)
    sc4, sh4 = _plain_affine(4)
    got_t = conv_transpose2d(xt2, wt2, stride=3, pad=1, scale=sc4, shift=sh4,
                             relu=False, out_dtype=jnp.float32)
    want_t = _ref_conv_transpose(xt2, wt2, stride=3, pad=1)
    assert got_t.shape == want_t.shape, (got_t.shape, want_t.shape)
    assert jnp.allclose(got_t, want_t, atol=5e-2, rtol=5e-2)

    # 4) Full SegmentationNN forward on a small, deterministic input.
    params = init_params(seed=0)
    xin = jax.random.normal(jax.random.PRNGKey(0), (2, 3, 64, 64), jnp.float32)
    out = jax.block_until_ready(segmentation_nn_forward(params, xin))
    # 64x64 -> backbone 2x2x512 -> decoder 1 -> 5 -> 18 -> 90, 24 channels.
    assert out.shape == (2, 24, 90, 90), out.shape
    assert bool(jnp.all(jnp.isfinite(out)))
    print("KERNEL_OK")
</pallas_src>

<mosaic_0001>
module attributes {stable_mosaic.version = 11 : i64} {
  func.func @_conv_tap_kernel(%arg0: i32, %arg1: memref<1x1x182x16xbf16, #tpu.memory_space<vmem>>, %arg2: memref<9x16x32xbf16, #tpu.memory_space<vmem>>, %arg3: memref<2x32xf32, #tpu.memory_space<vmem>>, %arg4: memref<1x140x32xf32, #tpu.memory_space<vmem>>) attributes {dimension_semantics = [#tpu.dimension_semantics<parallel>], iteration_bounds = array<i64: 2>, scalar_prefetch = 0 : i64, scratch_operands = 0 : i64, tpu.core_type = #tpu.core_type<tc>, window_params = [{transform_indices = @transform_0, window_bounds = array<i64: 1, 1, 182, 16>}, {pipeline_mode = #tpu.pipeline_mode<synchronous>, transform_indices = @transform_1, window_bounds = array<i64: 9, 16, 32>}, {pipeline_mode = #tpu.pipeline_mode<synchronous>, transform_indices = @transform_2, window_bounds = array<i64: 2, 32>}, {transform_indices = @transform_3, window_bounds = array<i64: 1, 140, 32>}]} {
    %c0 = arith.constant 0 : index
    %c0_0 = arith.constant 0 : index
    %c0_1 = arith.constant 0 : index
    %c0_2 = arith.constant 0 : index
    %0 = vector.load %arg1[%c0, %c0_0, %c0_1, %c0_2] : memref<1x1x182x16xbf16, #tpu.memory_space<vmem>>, vector<1x1x140x16xbf16>
    %1 = vector.shape_cast %0 : vector<1x1x140x16xbf16> to vector<140x16xbf16>
    %c0_3 = arith.constant 0 : index
    %c0_4 = arith.constant 0 : index
    %c0_5 = arith.constant 0 : index
    %2 = vector.load %arg2[%c0_3, %c0_4, %c0_5] : memref<9x16x32xbf16, #tpu.memory_space<vmem>>, vector<1x16x32xbf16>
    %3 = vector.shape_cast %2 : vector<1x16x32xbf16> to vector<16x32xbf16>
    %cst = arith.constant dense<0.000000e+00> : vector<140x32xf32>
    %4 = tpu.matmul %1, %3, %cst {dimension_numbers = #tpu.dot_dimension_numbers<[1], [0], [0], [1], [0, 0, 1, 1], [], []>} : vector<140x16xbf16>, vector<16x32xbf16>, vector<140x32xf32> -> vector<140x32xf32>
    %c0_6 = arith.constant 0 : index
    %c0_7 = arith.constant 0 : index
    %c1 = arith.constant 1 : index
    %c0_8 = arith.constant 0 : index
    %5 = vector.load %arg1[%c0_6, %c0_7, %c1, %c0_8] : memref<1x1x182x16xbf16, #tpu.memory_space<vmem>>, vector<1x1x140x16xbf16>
    %6 = vector.shape_cast %5 : vector<1x1x140x16xbf16> to vector<140x16xbf16>
    %c1_9 = arith.constant 1 : index
    %c0_10 = arith.constant 0 : index
    %c0_11 = arith.constant 0 : index
    %7 = vector.load %arg2[%c1_9, %c0_10, %c0_11] : memref<9x16x32xbf16, #tpu.memory_space<vmem>>, vector<1x16x32xbf16>
    %8 = vector.shape_cast %7 : vector<1x16x32xbf16> to vector<16x32xbf16>
    %cst_12 = arith.constant dense<0.000000e+00> : vector<140x32xf32>
    %9 = tpu.matmul %6, %8, %cst_12 {dimension_numbers = #tpu.dot_dimension_numbers<[1], [0], [0], [1], [0, 0, 1, 1], [], []>} : vector<140x16xbf16>, vector<16x32xbf16>, vector<140x32xf32> -> vector<140x32xf32>
    %10 = arith.addf %4, %9 : vector<140x32xf32>
    %c0_13 = arith.constant 0 : index
    %c0_14 = arith.constant 0 : index
    %c2 = arith.constant 2 : index
    %c0_15 = arith.constant 0 : index
    %11 = vector.load %arg1[%c0_13, %c0_14, %c2, %c0_15] : memref<1x1x182x16xbf16, #tpu.memory_space<vmem>>, vector<1x1x140x16xbf16>
    %12 = vector.shape_cast %11 : vector<1x1x140x16xbf16> to vector<140x16xbf16>
    %c2_16 = arith.constant 2 : index
    %c0_17 = arith.constant 0 : index
    %c0_18 = arith.constant 0 : index
    %13 = vector.load %arg2[%c2_16, %c0_17, %c0_18] : memref<9x16x32xbf16, #tpu.memory_space<vmem>>, vector<1x16x32xbf16>
    %14 = vector.shape_cast %13 : vector<1x16x32xbf16> to vector<16x32xbf16>
    %cst_19 = arith.constant dense<0.000000e+00> : vector<140x32xf32>
    %15 = tpu.matmul %12, %14, %cst_19 {dimension_numbers = #tpu.dot_dimension_numbers<[1], [0], [0], [1], [0, 0, 1, 1], [], []>} : vector<140x16xbf16>, vector<16x32xbf16>, vector<140x32xf32> -> vector<140x32xf32>
    %16 = arith.addf %10, %15 : vector<140x32xf32>
    %c0_20 = arith.constant 0 : index
    %c0_21 = arith.constant 0 : index
    %c14 = arith.constant 14 : index
    %c0_22 = arith.constant 0 : index
    %17 = vector.load %arg1[%c0_20, %c0_21, %c14, %c0_22] : memref<1x1x182x16xbf16, #tpu.memory_space<vmem>>, vector<1x1x140x16xbf16>
    %18 = vector.shape_cast %17 : vector<1x1x140x16xbf16> to vector<140x16xbf16>
    %c3 = arith.constant 3 : index
    %c0_23 = arith.constant 0 : index
    %c0_24 = arith.constant 0 : index
    %19 = vector.load %arg2[%c3, %c0_23, %c0_24] : memref<9x16x32xbf16, #tpu.memory_space<vmem>>, vector<1x16x32xbf16>
    %20 = vector.shape_cast %19 : vector<1x16x32xbf16> to vector<16x32xbf16>
    %cst_25 = arith.constant dense<0.000000e+00> : vector<140x32xf32>
    %21 = tpu.matmul %18, %20, %cst_25 {dimension_numbers = #tpu.dot_dimension_numbers<[1], [0], [0], [1], [0, 0, 1, 1], [], []>} : vector<140x16xbf16>, vector<16x32xbf16>, vector<140x32xf32> -> vector<140x32xf32>
    %22 = arith.addf %16, %21 : vector<140x32xf32>
    %c0_26 = arith.constant 0 : index
    %c0_27 = arith.constant 0 : index
    %c15 = arith.constant 15 : index
    %c0_28 = arith.constant 0 : index
    %23 = vector.load %arg1[%c0_26, %c0_27, %c15, %c0_28] : memref<1x1x182x16xbf16, #tpu.memory_space<vmem>>, vector<1x1x140x16xbf16>
    %24 = vector.shape_cast %23 : vector<1x1x140x16xbf16> to vector<140x16xbf16>
    %c4 = arith.constant 4 : index
    %c0_29 = arith.constant 0 : index
    %c0_30 = arith.constant 0 : index
    %25 = vector.load %arg2[%c4, %c0_29, %c0_30] : memref<9x16x32xbf16, #tpu.memory_space<vmem>>, vector<1x16x32xbf16>
    %26 = vector.shape_cast %25 : vector<1x16x32xbf16> to vector<16x32xbf16>
    %cst_31 = arith.constant dense<0.000000e+00> : vector<140x32xf32>
    %27 = tpu.matmul %24, %26, %cst_31 {dimension_numbers = #tpu.dot_dimension_numbers<[1], [0], [0], [1], [0, 0, 1, 1], [], []>} : vector<140x16xbf16>, vector<16x32xbf16>, vector<140x32xf32> -> vector<140x32xf32>
    %28 = arith.addf %22, %27 : vector<140x32xf32>
    %c0_32 = arith.constant 0 : index
    %c0_33 = arith.constant 0 : index
    %c16 = arith.constant 16 : index
    %c0_34 = arith.constant 0 : index
    %29 = vector.load %arg1[%c0_32, %c0_33, %c16, %c0_34] : memref<1x1x182x16xbf16, #tpu.memory_space<vmem>>, vector<1x1x140x16xbf16>
    %30 = vector.shape_cast %29 : vector<1x1x140x16xbf16> to vector<140x16xbf16>
    %c5 = arith.constant 5 : index
    %c0_35 = arith.constant 0 : index
    %c0_36 = arith.constant 0 : index
    %31 = vector.load %arg2[%c5, %c0_35, %c0_36] : memref<9x16x32xbf16, #tpu.memory_space<vmem>>, vector<1x16x32xbf16>
    %32 = vector.shape_cast %31 : vector<1x16x32xbf16> to vector<16x32xbf16>
    %cst_37 = arith.constant dense<0.000000e+00> : vector<140x32xf32>
    %33 = tpu.matmul %30, %32, %cst_37 {dimension_numbers = #tpu.dot_dimension_numbers<[1], [0], [0], [1], [0, 0, 1, 1], [], []>} : vector<140x16xbf16>, vector<16x32xbf16>, vector<140x32xf32> -> vector<140x32xf32>
    %34 = arith.addf %28, %33 : vector<140x32xf32>
    %c0_38 = arith.constant 0 : index
    %c0_39 = arith.constant 0 : index
    %c28 = arith.constant 28 : index
    %c0_40 = arith.constant 0 : index
    %35 = vector.load %arg1[%c0_38, %c0_39, %c28, %c0_40] : memref<1x1x182x16xbf16, #tpu.memory_space<vmem>>, vector<1x1x140x16xbf16>
    %36 = vector.shape_cast %35 : vector<1x1x140x16xbf16> to vector<140x16xbf16>
    %c6 = arith.constant 6 : index
    %c0_41 = arith.constant 0 : index
    %c0_42 = arith.constant 0 : index
    %37 = vector.load %arg2[%c6, %c0_41, %c0_42] : memref<9x16x32xbf16, #tpu.memory_space<vmem>>, vector<1x16x32xbf16>
    %38 = vector.shape_cast %37 : vector<1x16x32xbf16> to vector<16x32xbf16>
    %cst_43 = arith.constant dense<0.000000e+00> : vector<140x32xf32>
    %39 = tpu.matmul %36, %38, %cst_43 {dimension_numbers = #tpu.dot_dimension_numbers<[1], [0], [0], [1], [0, 0, 1, 1], [], []>} : vector<140x16xbf16>, vector<16x32xbf16>, vector<140x32xf32> -> vector<140x32xf32>
    %40 = arith.addf %34, %39 : vector<140x32xf32>
    %c0_44 = arith.constant 0 : index
    %c0_45 = arith.constant 0 : index
    %c29 = arith.constant 29 : index
    %c0_46 = arith.constant 0 : index
    %41 = vector.load %arg1[%c0_44, %c0_45, %c29, %c0_46] : memref<1x1x182x16xbf16, #tpu.memory_space<vmem>>, vector<1x1x140x16xbf16>
    %42 = vector.shape_cast %41 : vector<1x1x140x16xbf16> to vector<140x16xbf16>
    %c7 = arith.constant 7 : index
    %c0_47 = arith.constant 0 : index
    %c0_48 = arith.constant 0 : index
    %43 = vector.load %arg2[%c7, %c0_47, %c0_48] : memref<9x16x32xbf16, #tpu.memory_space<vmem>>, vector<1x16x32xbf16>
    %44 = vector.shape_cast %43 : vector<1x16x32xbf16> to vector<16x32xbf16>
    %cst_49 = arith.constant dense<0.000000e+00> : vector<140x32xf32>
    %45 = tpu.matmul %42, %44, %cst_49 {dimension_numbers = #tpu.dot_dimension_numbers<[1], [0], [0], [1], [0, 0, 1, 1], [], []>} : vector<140x16xbf16>, vector<16x32xbf16>, vector<140x32xf32> -> vector<140x32xf32>
    %46 = arith.addf %40, %45 : vector<140x32xf32>
    %c0_50 = arith.constant 0 : index
    %c0_51 = arith.constant 0 : index
    %c30 = arith.constant 30 : index
    %c0_52 = arith.constant 0 : index
    %47 = vector.load %arg1[%c0_50, %c0_51, %c30, %c0_52] : memref<1x1x182x16xbf16, #tpu.memory_space<vmem>>, vector<1x1x140x16xbf16>
    %48 = vector.shape_cast %47 : vector<1x1x140x16xbf16> to vector<140x16xbf16>
    %c8 = arith.constant 8 : index
    %c0_53 = arith.constant 0 : index
    %c0_54 = arith.constant 0 : index
    %49 = vector.load %arg2[%c8, %c0_53, %c0_54] : memref<9x16x32xbf16, #tpu.memory_space<vmem>>, vector<1x16x32xbf16>
    %50 = vector.shape_cast %49 : vector<1x16x32xbf16> to vector<16x32xbf16>
    %cst_55 = arith.constant dense<0.000000e+00> : vector<140x32xf32>
    %51 = tpu.matmul %48, %50, %cst_55 {dimension_numbers = #tpu.dot_dimension_numbers<[1], [0], [0], [1], [0, 0, 1, 1], [], []>} : vector<140x16xbf16>, vector<16x32xbf16>, vector<140x32xf32> -> vector<140x32xf32>
    %52 = arith.addf %46, %51 : vector<140x32xf32>
    %c0_56 = arith.constant 0 : index
    %c0_57 = arith.constant 0 : index
    %53 = vector.load %arg3[%c0_56, %c0_57] : memref<2x32xf32, #tpu.memory_space<vmem>>, vector<1x32xf32>
    %54 = vector.broadcast %53 : vector<1x32xf32> to vector<140x32xf32>
    %55 = arith.mulf %52, %54 : vector<140x32xf32>
    %c1_58 = arith.constant 1 : index
    %c0_59 = arith.constant 0 : index
    %56 = vector.load %arg3[%c1_58, %c0_59] : memref<2x32xf32, #tpu.memory_space<vmem>>, vector<1x32xf32>
    %57 = vector.broadcast %56 : vector<1x32xf32> to vector<140x32xf32>
    %58 = arith.addf %55, %57 : vector<140x32xf32>
    %cst_60 = arith.constant 0.000000e+00 : f32
    %59 = vector.broadcast %cst_60 : f32 to vector<140x32xf32>
    %60 = arith.maximumf %58, %59 : vector<140x32xf32>
    %c0_61 = arith.constant 0 : index
    %c0_62 = arith.constant 0 : index
    %c0_63 = arith.constant 0 : index
    %61 = vector.load %arg4[%c0_61, %c0_62, %c0_63] : memref<1x140x32xf32, #tpu.memory_space<vmem>>, vector<1x140x32xf32>
    %62 = vector.shape_cast %61 : vector<1x140x32xf32> to vector<140x32xf32>
    %63 = vector.shape_cast %60 : vector<140x32xf32> to vector<1x140x32xf32>
    tpu.vector_store %arg4[%c0_61, %c0_62, %c0_63], %63 {strides = array<i32>} : memref<1x140x32xf32, #tpu.memory_space<vmem>>, vector<1x140x32xf32>,
    return
  }
  func.func @transform_0(%arg0: i32) -> (i32, i32, i32, i32) {
    %c0_i32 = arith.constant 0 : i32
    %c0_i32_0 = arith.constant 0 : i32
    %c0_i32_1 = arith.constant 0 : i32
    %c0_i32_2 = arith.constant 0 : i32
    return %arg0, %c0_i32, %c0_i32_0, %c0_i32_1 : i32, i32, i32, i32
  }
  func.func @transform_1(%arg0: i32) -> (i32, i32, i32) {
    %c0_i32 = arith.constant 0 : i32
    %c0_i32_0 = arith.constant 0 : i32
    %c0_i32_1 = arith.constant 0 : i32
    %c0_i32_2 = arith.constant 0 : i32
    return %c0_i32, %c0_i32_0, %c0_i32_1 : i32, i32, i32
  }
  func.func @transform_2(%arg0: i32) -> (i32, i32) {
    %c0_i32 = arith.constant 0 : i32
    %c0_i32_0 = arith.constant 0 : i32
    %c0_i32_1 = arith.constant 0 : i32
    return %c0_i32, %c0_i32_0 : i32, i32
  }
  func.func @transform_3(%arg0: i32) -> (i32, i32, i32) {
    %c0_i32 = arith.constant 0 : i32
    %c0_i32_0 = arith.constant 0 : i32
    %c0_i32_1 = arith.constant 0 : i32
    return %arg0, %c0_i32, %c0_i32_0 : i32, i32, i32
  }
}

</mosaic_0001>

<llo_original>
// kernel: tpu_custom_call.1
$region0: #{tpu_custom_call.1}
  #allocation0 [shape = 'u32[]', space=smem, size = 0x4, offset = 0x4, fixed_abs, tag = 'smem constant byte address 0x4 - core index']
  #allocation1 [shape = 'u32[144,128]{1,0:T(1,128)}', space=vmem, size = 0x12000, scoped, tag = 'internal scratch']
  %s0 = inlined_call_operand.vmem [shape: bf16[2,1,182,16], index: 0, kind: input, shape index: {}]
  %s1 = inlined_call_operand.vmem [shape: bf16[9,16,32], index: 1, kind: input, shape index: {}]
  %s2 = inlined_call_operand.vmem [shape: f32[2,32], index: 2, kind: input, shape index: {}]
  %s3 = inlined_call_operand.vmem [shape: f32[2,140,32], index: 3, kind: output, shape index: {}]
  %s4 = sld [smem:[#allocation0]]
  $region45: #{tpu_custom_call.1} parent=0
    _
  %s6 = ssub.s32 1, %s4
  %s7 = scalar_select 0, %s6, %s4
  loop: start=0, step=1, limit=4
  $region2: #{tpu_custom_call.1} parent=0 // loop_pre_header
    _
  $region3: #{tpu_custom_call.1} parent=0 // loop_header
    %s9 = sphi 0, %s13
    %p10 = scmp.ge.s32.totalorder %s9, 4
    %s19 = sphi 0, %s21
    %s22 = sphi 0, %s19
    %s23 = sphi 0, %s22
    %s39 = sphi 0, %s23
    %s43 = sphi 0, %s43
    %s45 = sphi 0, %s43
    %s46 = sphi 0, %s45
    %s60 = sphi 0, %s46
    %s64 = sphi 0, %s64
    %s66 = sphi 0, %s64
    %s67 = sphi 0, %s66
    %s81 = sphi 0, %s67
    %s87 = sphi 0, %s89
    %s90 = sphi 0, %s87
    %s91 = sphi 0, %s90
    %s107 = sphi 0, %s91
  $region4: #{tpu_custom_call.1} parent=0 // loop_header_branch
    %12 = sbr.rel (%p10) target = $region8
  $region5: #{tpu_custom_call.1} parent=0 // loop_body
    %s14 = ssub.s32 %s9, 1
    %s15 = ssub.s32 %s9, 2
    %s16 = sadd.s32 %s9, 1
    %s17 = ssub.s32 %s9, %s16
    %p18 = scmp.eq.s32.totalorder %s17, 0
    %s20 = sadd.s32 %s19, 1
    %s21 = scalar_select %p18, %s19, %s20
    %p24 = pneg %p18
    %p25 = scmp.eq.s32.totalorder %s9, 1
    %p26 = por %p24, %p25
    %p27 = scmp.ne.s32.totalorder %s19, %s22
    %p28 = scmp.eq.s32.totalorder %s9, 0
    %p29 = por %p27, %p28
    %p30 = scmp.ne.s32.totalorder %s19, %s22
    %p31 = scmp.eq.s32.totalorder %s14, 1
    %p32 = por %p30, %p31
    %p33 = scmp.ne.s32.totalorder %s22, %s23
    %p34 = scmp.eq.s32.totalorder %s14, 0
    %p35 = por %p33, %p34
    %p36 = scmp.ne.s32.totalorder %s22, %s23
    %p37 = scmp.eq.s32.totalorder %s15, 1
    %p38 = por %p36, %p37
    %p40 = scmp.ne.s32.totalorder %s23, %s39
    %p41 = scmp.eq.s32.totalorder %s15, 0
    %p42 = por %p40, %p41
    %s44 = sadd.s32 %s43, 1
    %p47 = scmp.eq.s32.totalorder %s9, 1
    %p48 = scmp.ne.s32.totalorder %s43, %s45
    %p49 = scmp.eq.s32.totalorder %s9, 0
    %p50 = por %p48, %p49
    %p51 = scmp.ne.s32.totalorder %s43, %s45
    %p52 = scmp.eq.s32.totalorder %s14, 1
    %p53 = por %p51, %p52
    %p54 = scmp.ne.s32.totalorder %s45, %s46
    %p55 = scmp.eq.s32.totalorder %s14, 0
    %p56 = por %p54, %p55
    %p57 = scmp.ne.s32.totalorder %s45, %s46
    %p58 = scmp.eq.s32.totalorder %s15, 1
    %p59 = por %p57, %p58
    %p61 = scmp.ne.s32.totalorder %s46, %s60
    %p62 = scmp.eq.s32.totalorder %s15, 0
    %p63 = por %p61, %p62
    %s65 = sadd.s32 %s64, 1
    %p68 = scmp.eq.s32.totalorder %s9, 1
    %p69 = scmp.ne.s32.totalorder %s64, %s66
    %p70 = scmp.eq.s32.totalorder %s9, 0
    %p71 = por %p69, %p70
    %p72 = scmp.ne.s32.totalorder %s64, %s66
    %p73 = scmp.eq.s32.totalorder %s14, 1
    %p74 = por %p72, %p73
    %p75 = scmp.ne.s32.totalorder %s66, %s67
    %p76 = scmp.eq.s32.totalorder %s14, 0
    %p77 = por %p75, %p76
    %p78 = scmp.ne.s32.totalorder %s66, %s67
    %p79 = scmp.eq.s32.totalorder %s15, 1
    %p80 = por %p78, %p79
    %p82 = scmp.ne.s32.totalorder %s67, %s81
    %p83 = scmp.eq.s32.totalorder %s15, 0
    %p84 = por %p82, %p83
    %s85 = ssub.s32 %s9, %s16
    %p86 = scmp.eq.s32.totalorder %s85, 0
    %s88 = sadd.s32 %s87, 1
    %s89 = scalar_select %p86, %s87, %s88
    %p92 = pneg %p86
    %p93 = scmp.eq.s32.totalorder %s9, 1
    %p94 = por %p92, %p93
    %p95 = scmp.ne.s32.totalorder %s87, %s90
    %p96 = scmp.eq.s32.totalorder %s9, 0
    %p97 = por %p95, %p96
    %p98 = scmp.ne.s32.totalorder %s87, %s90
    %p99 = scmp.eq.s32.totalorder %s14, 1
    %p100 = por %p98, %p99
    %p101 = scmp.ne.s32.totalorder %s90, %s91
    %p102 = scmp.eq.s32.totalorder %s14, 0
    %p103 = por %p101, %p102
    %p104 = scmp.ne.s32.totalorder %s90, %s91
    %p105 = scmp.eq.s32.totalorder %s15, 1
    %p106 = por %p104, %p105
    %p108 = scmp.ne.s32.totalorder %s91, %s107
    %p109 = scmp.eq.s32.totalorder %s15, 0
    %p110 = por %p108, %p109
    %p111 = scmp.le.s32.totalorder 1, %s9
    %p112 = scmp.lt.s32.totalorder %s9, 3
    %p113 = pnand %p111, %p112
    %p114 = pneg %p113
    // Predicated region
    $region9: #{tpu_custom_call.1} parent=5 // pred_check
      _
    $region10: #{tpu_custom_call.1} parent=5 // pred_check_branch
      %116 = sbr.rel (%p113) target = $region12
    $region11: #{tpu_custom_call.1} parent=5 // pred_region
      %s117 = ssub.s32 %s9, 1
      // Predicated region
      $region13: #{tpu_custom_call.1} parent=11 // pred_check
        %p118 = pneg %p56
      $region14: #{tpu_custom_call.1} parent=11 // pred_check_branch
        %120 = sbr.rel (%p118) target = $region16
      $region15: #{tpu_custom_call.1} parent=11 // pred_region
        _
      $region16: #{tpu_custom_call.1} parent=11 // pred_fallthru
        _
      // Predicated region
      $region17: #{tpu_custom_call.1} parent=11 // pred_check
        %p121 = pneg %p77
      $region18: #{tpu_custom_call.1} parent=11 // pred_check_branch
        %123 = sbr.rel (%p121) target = $region20
      $region19: #{tpu_custom_call.1} parent=11 // pred_region
        _
      $region20: #{tpu_custom_call.1} parent=11 // pred_fallthru
        _
    $region12: #{tpu_custom_call.1} parent=5 // pred_fallthru
      _
    %p124 = scmp.lt.s32.totalorder %s9, 2
    // Predicated region
    $region21: #{tpu_custom_call.1} parent=5 // pred_check
      %p125 = pneg %p124
    $region22: #{tpu_custom_call.1} parent=5 // pred_check_branch
      %127 = sbr.rel (%p125) target = $region24
    $region23: #{tpu_custom_call.1} parent=5 // pred_region
      // Predicated region
      $region25: #{tpu_custom_call.1} parent=23 // pred_check
        %p128 = pneg %p29
      $region26: #{tpu_custom_call.1} parent=23 // pred_check_branch
        %130 = sbr.rel (%p128) target = $region28
      $region27: #{tpu_custom_call.1} parent=23 // pred_region
        %p131 = scmp.lt.s32.totalorder %s9, 1
        %s132 = scalar_select %p131, %s9, 1
        %s133 = smul.addr %s132, 23
        %s134 = smul.addr %s133, 4
        %s135 = scalar_lea.vmem %s0, %s134
      $region28: #{tpu_custom_call.1} parent=23 // pred_fallthru
        _
    $region24: #{tpu_custom_call.1} parent=5 // pred_fallthru
      _
    %p136 = scmp.le.s32.totalorder 1, %s9
    %p137 = scmp.lt.s32.totalorder %s9, 3
    %p138 = pnand %p136, %p137
    %p139 = pneg %p138
    // Predicated region
    $region29: #{tpu_custom_call.1} parent=5 // pred_check
      _
    $region30: #{tpu_custom_call.1} parent=5 // pred_check_branch
      %141 = sbr.rel (%p138) target = $region32
    $region31: #{tpu_custom_call.1} parent=5 // pred_region
      %s142 = ssub.s32 %s9, 1
      %p143 = scmp.lt.s32.totalorder %s14, 1
      %s144 = scalar_select %p143, %s14, 1
      %s145 = smul.addr %s144, 23
      %s146 = smul.addr %s145, 4
      %s147 = scalar_lea.vmem %s0, %s146
      %p148 = pneg %p35
      %p149 = pneg %p32
      %p150 = pneg %p56
      %p151 = pneg %p53
      %p152 = pneg %p77
      %p153 = pneg %p74
      %p154 = pneg %p103
      %p155 = pneg %p100
      %p156 = scmp.lt.s32.totalorder %s14, 1
      %s157 = scalar_select %p156, %s14, 1
      %s158 = smul.addr %s157, 18
      %s159 = smul.addr %s158, 8
      %s160 = scalar_lea.vmem %s3, %s159
      %p161 = scmp.lt.s32.totalorder %s14, 1
      %s162 = scalar_select %p161, %s14, 1
      %s163 = smul.addr %s162, 23
      %s164 = smul.addr %s163, 4
      %s165 = scalar_lea.vmem %s0, %s164
      %p166 = scmp.lt.s32.totalorder %s14, 1
      %s167 = scalar_select %p166, %s14, 1
      %s168 = smul.addr %s167, 18
      %s169 = smul.addr %s168, 8
      %s170 = scalar_lea.vmem %s3, %s169
      %v172 = vld [vmem:[%s165] sm:$0xf]
      %v173 = vld [vmem:[%s165 + $0x4] sm:$0xf]
      %v174 = vld [vmem:[%s165 + $0x8] sm:$0xf]
      %v175 = vld [vmem:[%s165 + $0xc] sm:$0xf]
      %v176 = vld [vmem:[%s165 + $0x10] sm:$0xf]
      %v177 = vld [vmem:[%s165 + $0x14] sm:$0xf]
      %v178 = vld [vmem:[%s165 + $0x18] sm:$0xf]
      %v179 = vld [vmem:[%s165 + $0x1c] sm:$0xf]
      %v180 = vld [vmem:[%s165 + $0x20] sm:$0xf]
      %v181 = vld [vmem:[%s165 + $0x24] sm:$0xf]
      %v182 = vld [vmem:[%s165 + $0x28] sm:$0xf]
      %v183 = vld [vmem:[%s165 + $0x2c] sm:$0xf]
      %v184 = vld [vmem:[%s165 + $0x30] sm:$0xf]
      %v185 = vld [vmem:[%s165 + $0x34] sm:$0xf]
      %v186 = vld [vmem:[%s165 + $0x38] sm:$0xf]
      %v187 = vld [vmem:[%s165 + $0x3c] sm:$0xf]
      %v188 = vld [vmem:[%s165 + $0x40] sm:$0xf]
      %v189 = vld [vmem:[%s165 + $0x44] sm:$0x3]
      %v190 = vld [vmem:[%s1] sm:$0xf]
      %v191 = vld [vmem:[%s1 + $0x4] sm:$0xf]
      %v192 = vld [vmem:[%s165 + $0x44] sm:$0x7]
      %s193 = scalar_lea.vmem %s1, 8
      %v194 = vld [vmem:[%s193] sm:$0xf]
      %v195 = vld [vmem:[%s193 + $0x4] sm:$0xf]
      %v214 = vunpack.c.l.b16 %v172
      %v215 = vunpack.c.l.b16 %v173
      %v216 = vunpack.c.l.b16 %v174
      %v217 = vunpack.c.l.b16 %v175
      %v218 = vunpack.c.l.b16 %v176
      %v219 = vunpack.c.l.b16 %v177
      %v220 = vunpack.c.l.b16 %v178
      %v221 = vunpack.c.l.b16 %v179
      %v222 = vunpack.c.l.b16 %v180
      %v223 = vunpack.c.l.b16 %v181
      %v224 = vunpack.c.l.b16 %v182
      %v225 = vunpack.c.l.b16 %v183
      %v226 = vunpack.c.l.b16 %v184
      %v227 = vunpack.c.l.b16 %v185
      %v228 = vunpack.c.l.b16 %v186
      %v229 = vunpack.c.l.b16 %v187
      %v230 = vunpack.c.l.b16 %v188
      %v231 = vunpack.c.l.b16 %v192
      %v232 = vpack.c.b16 %v215, %v214
      %v233 = vpack.c.b16 %v217, %v216
      %v234 = vpack.c.b16 %v219, %v218
      %v235 = vpack.c.b16 %v221, %v220
      %v236 = vpack.c.b16 %v223, %v222
      %v237 = vpack.c.b16 %v225, %v224
      %v238 = vpack.c.b16 %v227, %v226
      %v239 = vpack.c.b16 %v229, %v228
      %v240 = vpack.c.b16 %v231, %v230
      %vm241 = vsmask.f32 7424
      %v243 = vshrl.u32 %v232, 16
      %v245 = vshll.u32 %v232, 16
      %v247 = vrot.slane %v245, 1
      %v248 = vor.u32 %v243, %v247
      %v250 = vshll.u32 %v233, 16
      %v252 = vrot.slane %v250, 1
      %v253 = vsel %vm241, %v248, %v252
      %v254 = vshrl.u32 %v233, 16
      %v256 = vor.u32 %v254, %v252
      %v258 = vshll.u32 %v234, 16
      %v260 = vrot.slane %v258, 1
      %v261 = vsel %vm241, %v256, %v260
      %v262 = vshrl.u32 %v234, 16
      %v264 = vor.u32 %v262, %v260
      %v266 = vshll.u32 %v235, 16
      %v268 = vrot.slane %v266, 1
      %v269 = vsel %vm241, %v264, %v268
      %v270 = vshrl.u32 %v235, 16
      %v272 = vor.u32 %v270, %v268
      %v274 = vshll.u32 %v236, 16
      %v276 = vrot.slane %v274, 1
      %v277 = vsel %vm241, %v272, %v276
      %v278 = vshrl.u32 %v236, 16
      %v280 = vor.u32 %v278, %v276
      %v282 = vshll.u32 %v237, 16
      %v284 = vrot.slane %v282, 1
      %v285 = vsel %vm241, %v280, %v284
      %v286 = vshrl.u32 %v237, 16
      %v288 = vor.u32 %v286, %v284
      %v290 = vshll.u32 %v238, 16
      %v292 = vrot.slane %v290, 1
      %v293 = vsel %vm241, %v288, %v292
      %v294 = vshrl.u32 %v238, 16
      %v296 = vor.u32 %v294, %v292
      %v298 = vshll.u32 %v239, 16
      %v300 = vrot.slane %v298, 1
      %v301 = vsel %vm241, %v296, %v300
      %v302 = vshrl.u32 %v239, 16
      %v304 = vor.u32 %v302, %v300
      %v306 = vshll.u32 %v240, 16
      %v308 = vrot.slane %v306, 1
      %v309 = vsel %vm241, %v304, %v308
      %v310 = vshrl.u32 %v240, 16
      %v312 = vor.u32 %v310, %v308
      %v315 = vunpack.c.l.b16 %v194
      %v316 = vunpack.c.l.b16 %v195
      %v317 = vpack.c.b16 %v316, %v315
      %vm319 = vcmask 130048
      %v321 = vsel %vm319, %v253, 0
      %v324 = vsel %vm319, %v261, 0
      %v327 = vsel %vm319, %v269, 0
      %v330 = vsel %vm319, %v277, 0
      %v333 = vsel %vm319, %v285, 0
      %v336 = vsel %vm319, %v293, 0
      %v339 = vsel %vm319, %v301, 0
      %v342 = vsel %vm319, %v309, 0
      %v345 = vsel %vm319, %v312, 0
      %347 = vmatprep.subr.bf16.mxu0 0
      %348 = vmatpush1.bf16.msra.mxu0 %v317
      %349 = vmatprep.subr.bf16.mxu0 0
      %350 = vmatpush1.bf16.msra.mxu0 0
      %351 = vmatprep.subr.bf16.mxu0 0
      %352 = vmatpush1.bf16.msra.mxu0 0
      %353 = vmatprep.subr.bf16.mxu0 0
      %354 = vmatpush1.bf16.msra.mxu0 0
      %355 = vmatprep.subr.bf16.mxu0 0
      %356 = vmatpush1.bf16.msra.mxu0 0
      %357 = vmatprep.subr.bf16.mxu0 0
      %358 = vmatpush1.bf16.msra.mxu0 0
      %359 = vmatprep.subr.bf16.mxu0 0
      %360 = vmatpush1.bf16.msra.mxu0 0
      %361 = vmatprep.subr.bf16.mxu0 0
      %362 = vmatpush1.bf16.msra.mxu0 0
      %363 = vmatprep.subr.bf16.mxu0 0
      %364 = vmatpush1.bf16.msra.mxu0 0
      %365 = vmatprep.subr.bf16.mxu0 0
      %366 = vmatpush1.bf16.msra.mxu0 0
      %367 = vmatprep.subr.bf16.mxu0 0
      %368 = vmatpush1.bf16.msra.mxu0 0
      %369 = vmatprep.subr.bf16.mxu0 0
      %370 = vmatpush1.bf16.msra.mxu0 0
      %371 = vmatprep.subr.bf16.mxu0 0
      %372 = vmatpush1.bf16.msra.mxu0 0
      %373 = vmatprep.subr.bf16.mxu0 0
      %374 = vmatpush1.bf16.msra.mxu0 0
      %375 = vmatprep.subr.bf16.mxu0 0
      %376 = vmatpush1.bf16.msra.mxu0 0
      %377 = vmatprep.subr.bf16.mxu0 0
      %378 = vmatpush1.bf16.msra.mxu0 0
      %379 = vmatprep.mubr.bf16.mxu0 0
      %380 = vmatmul.mubr.bf16.gmra.mrb[0].mxu0 %v321
      %v381 = vpop.f32.mrb[0].mxu0
      %v382 = vadd.f32 0.0, %v381
      %v383 = vpop.f32.mrb[0].mxu0
      %v384 = vpop.f32.mrb[0].mxu0
      %v385 = vadd.f32 0.0, %v384
      %v386 = vpop.f32.mrb[0].mxu0
      %387 = vmatprep.mubr.bf16.mxu0 0
      %388 = vmatmul.mubr.bf16.gmra.mrb[0].mxu0 %v324
      %v389 = vpop.f32.mrb[0].mxu0
      %v390 = vadd.f32 0.0, %v389
      %v391 = vpop.f32.mrb[0].mxu0
      %v392 = vpop.f32.mrb[0].mxu0
      %v393 = vadd.f32 0.0, %v392
      %v394 = vpop.f32.mrb[0].mxu0
      %395 = vmatprep.mubr.bf16.mxu0 0
      %396 = vmatmul.mubr.bf16.gmra.mrb[0].mxu0 %v327
      %v397 = vpop.f32.mrb[0].mxu0
      %v398 = vadd.f32 0.0, %v397
      %v399 = vpop.f32.mrb[0].mxu0
      %v400 = vpop.f32.mrb[0].mxu0
      %v401 = vadd.f32 0.0, %v400
      %v402 = vpop.f32.mrb[0].mxu0
      %403 = vmatprep.mubr.bf16.mxu0 0
      %404 = vmatmul.mubr.bf16.gmra.mrb[0].mxu0 %v330
      %v405 = vpop.f32.mrb[0].mxu0
      %v406 = vadd.f32 0.0, %v405
      %v407 = vpop.f32.mrb[0].mxu0
      %v408 = vpop.f32.mrb[0].mxu0
      %v409 = vadd.f32 0.0, %v408
      %v410 = vpop.f32.mrb[0].mxu0
      %411 = vmatprep.mubr.bf16.mxu0 0
      %412 = vmatmul.mubr.bf16.gmra.mrb[0].mxu0 %v333
      %v413 = vpop.f32.mrb[0].mxu0
      %v414 = vadd.f32 0.0, %v413
      %v415 = vpop.f32.mrb[0].mxu0
      %v416 = vpop.f32.mrb[0].mxu0
      %v417 = vadd.f32 0.0, %v416
      %v418 = vpop.f32.mrb[0].mxu0
      %419 = vmatprep.mubr.bf16.mxu0 0
      %420 = vmatmul.mubr.bf16.gmra.mrb[0].mxu0 %v336
      %v421 = vpop.f32.mrb[0].mxu0
      %v422 = vadd.f32 0.0, %v421
      %v423 = vpop.f32.mrb[0].mxu0
      %v424 = vpop.f32.mrb[0].mxu0
      %v425 = vadd.f32 0.0, %v424
      %v426 = vpop.f32.mrb[0].mxu0
      %427 = vmatprep.mubr.bf16.mxu0 0
      %428 = vmatmul.mubr.bf16.gmra.mrb[0].mxu0 %v339
      %v429 = vpop.f32.mrb[0].mxu0
      %v430 = vadd.f32 0.0, %v429
      %v431 = vpop.f32.mrb[0].mxu0
      %v432 = vpop.f32.mrb[0].mxu0
      %v433 = vadd.f32 0.0, %v432
      %v434 = vpop.f32.mrb[0].mxu0
      %435 = vmatprep.mubr.bf16.mxu0 0
      %436 = vmatmul.mubr.bf16.gmra.mrb[0].mxu0 %v342
      %v437 = vpop.f32.mrb[0].mxu0
      %v438 = vadd.f32 0.0, %v437
      %v439 = vpop.f32.mrb[0].mxu0
      %v440 = vpop.f32.mrb[0].mxu0
      %v441 = vadd.f32 0.0, %v440
      %v442 = vpop.f32.mrb[0].mxu0
      %443 = vmatprep.mubr.bf16.mxu0 0
      %444 = vmatmul.mubr.bf16.gmra.mrb[0].mxu0 %v345
      %v445 = vpop.f32.mrb[0].mxu0
      %v446 = vadd.f32 0.0, %v445
      %v447 = vpop.f32.mrb[0].mxu0
      %v448 = vpop.f32.mrb[0].mxu0
      %v449 = vadd.f32 0.0, %v448
      %v450 = vpop.f32.mrb[0].mxu0
      %451 = vdwg.mxu0
      %v453 = vunpack.c.l.b16 %v189
      %v454 = vpack.c.b16 %v453, %v230
      %v457 = vunpack.c.l.b16 %v190
      %v458 = vunpack.c.l.b16 %v191
      %v459 = vpack.c.b16 %v458, %v457
      %v461 = vsel %vm319, %v232, 0
      %v463 = vsel %vm319, %v233, 0
      %v465 = vsel %vm319, %v234, 0
      %v467 = vsel %vm319, %v235, 0
      %v469 = vsel %vm319, %v236, 0
      %v471 = vsel %vm319, %v237, 0
      %v473 = vsel %vm319, %v238, 0
      %v475 = vsel %vm319, %v239, 0
      %v478 = vsel %vm319, %v454, 0
      %480 = vmatprep.subr.bf16.mxu0 0
      %481 = vmatpush1.bf16.msra.mxu0 %v459
      %482 = vmatprep.subr.bf16.mxu0 0
      %483 = vmatpush1.bf16.msra.mxu0 0
      %484 = vmatprep.subr.bf16.mxu0 0
      %485 = vmatpush1.bf16.msra.mxu0 0
      %486 = vmatprep.subr.bf16.mxu0 0
      %487 = vmatpush1.bf16.msra.mxu0 0
      %488 = vmatprep.subr.bf16.mxu0 0
      %489 = vmatpush1.bf16.msra.mxu0 0
      %490 = vmatprep.subr.bf16.mxu0 0
      %491 = vmatpush1.bf16.msra.mxu0 0
      %492 = vmatprep.subr.bf16.mxu0 0
      %493 = vmatpush1.bf16.msra.mxu0 0
      %494 = vmatprep.subr.bf16.mxu0 0
      %495 = vmatpush1.bf16.msra.mxu0 0
      %496 = vmatprep.subr.bf16.mxu0 0
      %497 = vmatpush1.bf16.msra.mxu0 0
      %498 = vmatprep.subr.bf16.mxu0 0
      %499 = vmatpush1.bf16.msra.mxu0 0
      %500 = vmatprep.subr.bf16.mxu0 0
      %501 = vmatpush1.bf16.msra.mxu0 0
      %502 = vmatprep.subr.bf16.mxu0 0
      %503 = vmatpush1.bf16.msra.mxu0 0
      %504 = vmatprep.subr.bf16.mxu0 0
      %505 = vmatpush1.bf16.msra.mxu0 0
      %506 = vmatprep.subr.bf16.mxu0 0
      %507 = vmatpush1.bf16.msra.mxu0 0
      %508 = vmatprep.subr.bf16.mxu0 0
      %509 = vmatpush1.bf16.msra.mxu0 0
      %510 = vmatprep.subr.bf16.mxu0 0
      %511 = vmatpush1.bf16.msra.mxu0 0
      %512 = vmatprep.mubr.bf16.mxu0 0
      %513 = vmatmul.mubr.bf16.gmra.mrb[0].mxu0 %v461
      %v514 = vpop.f32.mrb[0].mxu0
      %v515 = vadd.f32 %v382, %v514
      %v516 = vpop.f32.mrb[0].mxu0
      %v517 = vpop.f32.mrb[0].mxu0
      %v518 = vadd.f32 %v385, %v517
      %v519 = vpop.f32.mrb[0].mxu0
      %520 = vmatprep.mubr.bf16.mxu0 0
      %521 = vmatmul.mubr.bf16.gmra.mrb[0].mxu0 %v463
      %v522 = vpop.f32.mrb[0].mxu0
      %v523 = vadd.f32 %v390, %v522
      %v524 = vpop.f32.mrb[0].mxu0
      %v525 = vpop.f32.mrb[0].mxu0
      %v526 = vadd.f32 %v393, %v525
      %v527 = vpop.f32.mrb[0].mxu0
      %528 = vmatprep.mubr.bf16.mxu0 0
      %529 = vmatmul.mubr.bf16.gmra.mrb[0].mxu0 %v465
      %v530 = vpop.f32.mrb[0].mxu0
      %v531 = vadd.f32 %v398, %v530
      %v532 = vpop.f32.mrb[0].mxu0
      %v533 = vpop.f32.mrb[0].mxu0
      %v534 = vadd.f32 %v401, %v533
      %v535 = vpop.f32.mrb[0].mxu0
      %536 = vmatprep.mubr.bf16.mxu0 0
      %537 = vmatmul.mubr.bf16.gmra.mrb[0].mxu0 %v467
      %v538 = vpop.f32.mrb[0].mxu0
      %v539 = vadd.f32 %v406, %v538
      %v540 = vpop.f32.mrb[0].mxu0
      %v541 = vpop.f32.mrb[0].mxu0
      %v542 = vadd.f32 %v409, %v541
      %v543 = vpop.f32.mrb[0].mxu0
      %544 = vmatprep.mubr.bf16.mxu0 0
      %545 = vmatmul.mubr.bf16.gmra.mrb[0].mxu0 %v469
      %v546 = vpop.f32.mrb[0].mxu0
      %v547 = vadd.f32 %v414, %v546
      %v548 = vpop.f32.mrb[0].mxu0
      %v549 = vpop.f32.mrb[0].mxu0
      %v550 = vadd.f32 %v417, %v549
      %v551 = vpop.f32.mrb[0].mxu0
      %552 = vmatprep.mubr.bf16.mxu0 0
      %553 = vmatmul.mubr.bf16.gmra.mrb[0].mxu0 %v471
      %v554 = vpop.f32.mrb[0].mxu0
      %v555 = vadd.f32 %v422, %v554
      %v556 = vpop.f32.mrb[0].mxu0
      %v557 = vpop.f32.mrb[0].mxu0
      %v558 = vadd.f32 %v425, %v557
      %v559 = vpop.f32.mrb[0].mxu0
      %560 = vmatprep.mubr.bf16.mxu0 0
      %561 = vmatmul.mubr.bf16.gmra.mrb[0].mxu0 %v473
      %v562 = vpop.f32.mrb[0].mxu0
      %v563 = vadd.f32 %v430, %v562
      %v564 = vpop.f32.mrb[0].mxu0
      %v565 = vpop.f32.mrb[0].mxu0
      %v566 = vadd.f32 %v433, %v565
      %v567 = vpop.f32.mrb[0].mxu0
      %568 = vmatprep.mubr.bf16.mxu0 0
      %569 = vmatmul.mubr.bf16.gmra.mrb[0].mxu0 %v475
      %v570 = vpop.f32.mrb[0].mxu0
      %v571 = vadd.f32 %v438, %v570
      %v572 = vpop.f32.mrb[0].mxu0
      %v573 = vpop.f32.mrb[0].mxu0
      %v574 = vadd.f32 %v441, %v573
      %v575 = vpop.f32.mrb[0].mxu0
      %576 = vmatprep.mubr.bf16.mxu0 0
      %577 = vmatmul.mubr.bf16.gmra.mrb[0].mxu0 %v478
      %v578 = vpop.f32.mrb[0].mxu0
      %v579 = vadd.f32 %v446, %v578
      %v580 = vpop.f32.mrb[0].mxu0
      %v581 = vpop.f32.mrb[0].mxu0
      %v582 = vadd.f32 %v449, %v581
      %v583 = vpop.f32.mrb[0].mxu0
      %584 = vdwg.mxu0
      %v585 = vld [vmem:[%s165] sm:$0xe]
      %s586 = scalar_lea.vmem %s1, 16
      %v587 = vld [vmem:[%s586] sm:$0xf]
      %v588 = vld [vmem:[%s586 + $0x4] sm:$0xf]
      %v590 = vunpack.c.l.b16 %v585
      %v591 = vpack.c.b16 %v215, %v590
      %vm592 = vcmask 1046528
      %v593 = vrot.slane %v591, 1
      %v594 = vrot.slane %v233, 1
      %v595 = vsel %vm592, %v593, %v594
      %v596 = vrot.slane %v234, 1
      %v597 = vsel %vm592, %v594, %v596
      %v598 = vrot.slane %v235, 1
      %v599 = vsel %vm592, %v596, %v598
      %v600 = vrot.slane %v236, 1
      %v601 = vsel %vm592, %v598, %v600
      %v602 = vrot.slane %v237, 1
      %v603 = vsel %vm592, %v600, %v602
      %v604 = vrot.slane %v238, 1
      %v605 = vsel %vm592, %v602, %v604
      %v606 = vrot.slane %v239, 1
      %v607 = vsel %vm592, %v604, %v606
      %v608 = vrot.slane %v240, 1
      %v609 = vsel %vm592, %v606, %v608
      %v612 = vunpack.c.l.b16 %v587
      %v613 = vunpack.c.l.b16 %v588
      %v614 = vpack.c.b16 %v613, %v612
      %v617 = vsel %vm319, %v595, 0
      %v620 = vsel %vm319, %v597, 0
      %v623 = vsel %vm319, %v599, 0
      %v626 = vsel %vm319, %v601, 0
      %v629 = vsel %vm319, %v603, 0
      %v632 = vsel %vm319, %v605, 0
      %v635 = vsel %vm319, %v607, 0
      %v638 = vsel %vm319, %v609, 0
      %v641 = vsel %vm319, %v608, 0
      %643 = vmatprep.subr.bf16.mxu0 0
      %644 = vmatpush1.bf16.msra.mxu0 %v614
      %645 = vmatprep.subr.bf16.mxu0 0
      %646 = vmatpush1.bf16.msra.mxu0 0
      %647 = vmatprep.subr.bf16.mxu0 0
      %648 = vmatpush1.bf16.msra.mxu0 0
      %649 = vmatprep.subr.bf16.mxu0 0
      %650 = vmatpush1.bf16.msra.mxu0 0
      %651 = vmatprep.subr.bf16.mxu0 0
      %652 = vmatpush1.bf16.msra.mxu0 0
      %653 = vmatprep.subr.bf16.mxu0 0
      %654 = vmatpush1.bf16.msra.mxu0 0
      %655 = vmatprep.subr.bf16.mxu0 0
      %656 = vmatpush1.bf16.msra.mxu0 0
      %657 = vmatprep.subr.bf16.mxu0 0
      %658 = vmatpush1.bf16.msra.mxu0 0
      %659 = vmatprep.subr.bf16.mxu0 0
      %660 = vmatpush1.bf16.msra.mxu0 0
      %661 = vmatprep.subr.bf16.mxu0 0
      %662 = vmatpush1.bf16.msra.mxu0 0
      %663 = vmatprep.subr.bf16.mxu0 0
      %664 = vmatpush1.bf16.msra.mxu0 0
      %665 = vmatprep.subr.bf16.mxu0 0
      %666 = vmatpush1.bf16.msra.mxu0 0
      %667 = vmatprep.subr.bf16.mxu0 0
      %668 = vmatpush1.bf16.msra.mxu0 0
      %669 = vmatprep.subr.bf16.mxu0 0
      %670 = vmatpush1.bf16.msra.mxu0 0
      %671 = vmatprep.subr.bf16.mxu0 0
      %672 = vmatpush1.bf16.msra.mxu0 0
      %673 = vmatprep.subr.bf16.mxu0 0
      %674 = vmatpush1.bf16.msra.mxu0 0
      %675 = vmatprep.mubr.bf16.mxu0 0
      %676 = vmatmul.mubr.bf16.gmra.mrb[0].mxu0 %v617
      %v677 = vpop.f32.mrb[0].mxu0
      %v678 = vadd.f32 0.0, %v677
      %v679 = vpop.f32.mrb[0].mxu0
      %v680 = vpop.f32.mrb[0].mxu0
      %v681 = vadd.f32 0.0, %v680
      %v682 = vpop.f32.mrb[0].mxu0
      %683 = vmatprep.mubr.bf16.mxu0 0
      %684 = vmatmul.mubr.bf16.gmra.mrb[0].mxu0 %v620
      %v685 = vpop.f32.mrb[0].mxu0
      %v686 = vadd.f32 0.0, %v685
      %v687 = vpop.f32.mrb[0].mxu0
      %v688 = vpop.f32.mrb[0].mxu0
      %v689 = vadd.f32 0.0, %v688
      %v690 = vpop.f32.mrb[0].mxu0
      %691 = vmatprep.mubr.bf16.mxu0 0
      %692 = vmatmul.mubr.bf16.gmra.mrb[0].mxu0 %v623
      %v693 = vpop.f32.mrb[0].mxu0
      %v694 = vadd.f32 0.0, %v693
      %v695 = vpop.f32.mrb[0].mxu0
      %v696 = vpop.f32.mrb[0].mxu0
      %v697 = vadd.f32 0.0, %v696
      %v698 = vpop.f32.mrb[0].mxu0
      %699 = vmatprep.mubr.bf16.mxu0 0
      %700 = vmatmul.mubr.bf16.gmra.mrb[0].mxu0 %v626
      %v701 = vpop.f32.mrb[0].mxu0
      %v702 = vadd.f32 0.0, %v701
      %v703 = vpop.f32.mrb[0].mxu0
      %v704 = vpop.f32.mrb[0].mxu0
      %v705 = vadd.f32 0.0, %v704
      %v706 = vpop.f32.mrb[0].mxu0
      %707 = vmatprep.mubr.bf16.mxu0 0
      %708 = vmatmul.mubr.bf16.gmra.mrb[0].mxu0 %v629
      %v709 = vpop.f32.mrb[0].mxu0
      %v710 = vadd.f32 0.0, %v709
      %v711 = vpop.f32.mrb[0].mxu0
      %v712 = vpop.f32.mrb[0].mxu0
      %v713 = vadd.f32 0.0, %v712
      %v714 = vpop.f32.mrb[0].mxu0
      %715 = vmatprep.mubr.bf16.mxu0 0
      %716 = vmatmul.mubr.bf16.gmra.mrb[0].mxu0 %v632
      %v717 = vpop.f32.mrb[0].mxu0
      %v718 = vadd.f32 0.0, %v717
      %v719 = vpop.f32.mrb[0].mxu0
      %v720 = vpop.f32.mrb[0].mxu0
      %v721 = vadd.f32 0.0, %v720
      %v722 = vpop.f32.mrb[0].mxu0
      %723 = vmatprep.mubr.bf16.mxu0 0
      %724 = vmatmul.mubr.bf16.gmra.mrb[0].mxu0 %v635
      %v725 = vpop.f32.mrb[0].mxu0
      %v726 = vadd.f32 0.0, %v725
      %v727 = vpop.f32.mrb[0].mxu0
      %v728 = vpop.f32.mrb[0].mxu0
      %v729 = vadd.f32 0.0, %v728
      %v730 = vpop.f32.mrb[0].mxu0
      %731 = vmatprep.mubr.bf16.mxu0 0
      %732 = vmatmul.mubr.bf16.gmra.mrb[0].mxu0 %v638
      %v733 = vpop.f32.mrb[0].mxu0
      %v734 = vadd.f32 0.0, %v733
      %v735 = vpop.f32.mrb[0].mxu0
      %v736 = vpop.f32.mrb[0].mxu0
      %v737 = vadd.f32 0.0, %v736
      %v738 = vpop.f32.mrb[0].mxu0
      %739 = vmatprep.mubr.bf16.mxu0 0
      %740 = vmatmul.mubr.bf16.gmra.mrb[0].mxu0 %v641
      %v741 = vpop.f32.mrb[0].mxu0
      %v742 = vadd.f32 0.0, %v741
      %v743 = vpop.f32.mrb[0].mxu0
      %v744 = vpop.f32.mrb[0].mxu0
      %v745 = vadd.f32 0.0, %v744
      %v746 = vpop.f32.mrb[0].mxu0
      %747 = vdwg.mxu0
      %v748 = vadd.f32 %v515, %v678
      %v749 = vadd.f32 %v518, %v681
      %v750 = vadd.f32 %v523, %v686
      %v751 = vadd.f32 %v526, %v689
      %v752 = vadd.f32 %v531, %v694
      %v753 = vadd.f32 %v534, %v697
      %v754 = vadd.f32 %v539, %v702
      %v755 = vadd.f32 %v542, %v705
      %v756 = vadd.f32 %v547, %v710
      %v757 = vadd.f32 %v550, %v713
      %v758 = vadd.f32 %v555, %v718
      %v759 = vadd.f32 %v558, %v721
      %v760 = vadd.f32 %v563, %v726
      %v761 = vadd.f32 %v566, %v729
      %v762 = vadd.f32 %v571, %v734
      %v763 = vadd.f32 %v574, %v737
      %v764 = vadd.f32 %v579, %v742
      %v765 = vadd.f32 %v582, %v745
      %v766 = vld [vmem:[%s165 + $0x4] sm:$0x8]
      %v767 = vld [vmem:[%s165 + $0x8] sm:$0xf]
      %v768 = vld [vmem:[%s165 + $0xc] sm:$0xf]
      %v769 = vld [vmem:[%s165 + $0x10] sm:$0xf]
      %v770 = vld [vmem:[%s165 + $0x14] sm:$0xf]
      %v771 = vld [vmem:[%s165 + $0x18] sm:$0xf]
      %v772 = vld [vmem:[%s165 + $0x1c] sm:$0xf]
      %v773 = vld [vmem:[%s165 + $0x20] sm:$0xf]
      %v774 = vld [vmem:[%s165 + $0x24] sm:$0xf]
      %v775 = vld [vmem:[%s165 + $0x28] sm:$0xf]
      %v776 = vld [vmem:[%s165 + $0x2c] sm:$0xf]
      %v777 = vld [vmem:[%s165 + $0x30] sm:$0xf]
      %v778 = vld [vmem:[%s165 + $0x34] sm:$0xf]
      %v779 = vld [vmem:[%s165 + $0x38] sm:$0xf]
      %v780 = vld [vmem:[%s165 + $0x3c] sm:$0xf]
      %v781 = vld [vmem:[%s165 + $0x40] sm:$0xf]
      %v782 = vld [vmem:[%s165 + $0x44] sm:$0xf]
      %v783 = vld [vmem:[%s165 + $0x48] sm:$0xf]
      %v784 = vld [vmem:[%s165 + $0x4c] sm:$0x1]
      %s785 = scalar_lea.vmem %s1, 24
      %v786 = vld [vmem:[%s785] sm:$0xf]
      %v787 = vld [vmem:[%s785 + $0x4] sm:$0xf]
      %v807 = vunpack.c.l.b16 %v766
      %v808 = vunpack.c.l.b16 %v767
      %v809 = vunpack.c.l.b16 %v768
      %v810 = vunpack.c.l.b16 %v769
      %v811 = vunpack.c.l.b16 %v770
      %v812 = vunpack.c.l.b16 %v771
      %v813 = vunpack.c.l.b16 %v772
      %v814 = vunpack.c.l.b16 %v773
      %v815 = vunpack.c.l.b16 %v774
      %v816 = vunpack.c.l.b16 %v775
      %v817 = vunpack.c.l.b16 %v776
      %v818 = vunpack.c.l.b16 %v777
      %v819 = vunpack.c.l.b16 %v778
      %v820 = vunpack.c.l.b16 %v779
      %v821 = vunpack.c.l.b16 %v780
      %v822 = vunpack.c.l.b16 %v781
      %v823 = vunpack.c.l.b16 %v782
      %v824 = vunpack.c.l.b16 %v783
      %v825 = vunpack.c.l.b16 %v784
      %v826 = vpack.c.b16 %v808, %v807
      %v827 = vpack.c.b16 %v810, %v809
      %v828 = vpack.c.b16 %v812, %v811
      %v829 = vpack.c.b16 %v814, %v813
      %v830 = vpack.c.b16 %v816, %v815
      %v831 = vpack.c.b16 %v818, %v817
      %v832 = vpack.c.b16 %v820, %v819
      %v833 = vpack.c.b16 %v822, %v821
      %v834 = vpack.c.b16 %v824, %v823
      %v835 = vpack.c.b16 %v825, %v825
      %vm836 = vcmask 1044480
      %v837 = vrot.slane %v826, 3
      %v838 = vrot.slane %v827, 3
      %v839 = vsel %vm836, %v837, %v838
      %v840 = vrot.slane %v828, 3
      %v841 = vsel %vm836, %v838, %v840
      %v842 = vrot.slane %v829, 3
      %v843 = vsel %vm836, %v840, %v842
      %v844 = vrot.slane %v830, 3
      %v845 = vsel %vm836, %v842, %v844
      %v846 = vrot.slane %v831, 3
      %v847 = vsel %vm836, %v844, %v846
      %v848 = vrot.slane %v832, 3
      %v849 = vsel %vm836, %v846, %v848
      %v850 = vrot.slane %v833, 3
      %v851 = vsel %vm836, %v848, %v850
      %v852 = vrot.slane %v834, 3
      %v853 = vsel %vm836, %v850, %v852
      %v854 = vrot.slane %v835, 3
      %v855 = vsel %vm836, %v852, %v854
      %v858 = vunpack.c.l.b16 %v786
      %v859 = vunpack.c.l.b16 %v787
      %v860 = vpack.c.b16 %v859, %v858
      %v863 = vsel %vm319, %v839, 0
      %v866 = vsel %vm319, %v841, 0
      %v869 = vsel %vm319, %v843, 0
      %v872 = vsel %vm319, %v845, 0
      %v875 = vsel %vm319, %v847, 0
      %v878 = vsel %vm319, %v849, 0
      %v881 = vsel %vm319, %v851, 0
      %v884 = vsel %vm319, %v853, 0
      %v887 = vsel %vm319, %v855, 0
      %889 = vmatprep.subr.bf16.mxu0 0
      %890 = vmatpush1.bf16.msra.mxu0 %v860
      %891 = vmatprep.subr.bf16.mxu0 0
      %892 = vmatpush1.bf16.msra.mxu0 0
      %893 = vmatprep.subr.bf16.mxu0 0
      %894 = vmatpush1.bf16.msra.mxu0 0
      %895 = vmatprep.subr.bf16.mxu0 0
      %896 = vmatpush1.bf16.msra.mxu0 0
      %897 = vmatprep.subr.bf16.mxu0 0
      %898 = vmatpush1.bf16.msra.mxu0 0
      %899 = vmatprep.subr.bf16.mxu0 0
      %900 = vmatpush1.bf16.msra.mxu0 0
      %901 = vmatprep.subr.bf16.mxu0 0
      %902 = vmatpush1.bf16.msra.mxu0 0
      %903 = vmatprep.subr.bf16.mxu0 0
      %904 = vmatpush1.bf16.msra.mxu0 0
      %905 = vmatprep.subr.bf16.mxu0 0
      %906 = vmatpush1.bf16.msra.mxu0 0
      %907 = vmatprep.subr.bf16.mxu0 0
      %908 = vmatpush1.bf16.msra.mxu0 0
      %909 = vmatprep.subr.bf16.mxu0 0
      %910 = vmatpush1.bf16.msra.mxu0 0
      %911 = vmatprep.subr.bf16.mxu0 0
      %912 = vmatpush1.bf16.msra.mxu0 0
      %913 = vmatprep.subr.bf16.mxu0 0
      %914 = vmatpush1.bf16.msra.mxu0 0
      %915 = vmatprep.subr.bf16.mxu0 0
      %916 = vmatpush1.bf16.msra.mxu0 0
      %917 = vmatprep.subr.bf16.mxu0 0
      %918 = vmatpush1.bf16.msra.mxu0 0
      %919 = vmatprep.subr.bf16.mxu0 0
      %920 = vmatpush1.bf16.msra.mxu0 0
      %921 = vmatprep.mubr.bf16.mxu0 0
      %922 = vmatmul.mubr.bf16.gmra.mrb[0].mxu0 %v863
      %v923 = vpop.f32.mrb[0].mxu0
      %v924 = vadd.f32 0.0, %v923
      %v925 = vpop.f32.mrb[0].mxu0
      %v926 = vpop.f32.mrb[0].mxu0
      %v927 = vadd.f32 0.0, %v926
      %v928 = vpop.f32.mrb[0].mxu0
      %929 = vmatprep.mubr.bf16.mxu0 0
      %930 = vmatmul.mubr.bf16.gmra.mrb[0].mxu0 %v866
      %v931 = vpop.f32.mrb[0].mxu0
      %v932 = vadd.f32 0.0, %v931
      %v933 = vpop.f32.mrb[0].mxu0
      %v934 = vpop.f32.mrb[0].mxu0
      %v935 = vadd.f32 0.0, %v934
      %v936 = vpop.f32.mrb[0].mxu0
      %937 = vmatprep.mubr.bf16.mxu0 0
      %938 = vmatmul.mubr.bf16.gmra.mrb[0].mxu0 %v869
      %v939 = vpop.f32.mrb[0].mxu0
      %v940 = vadd.f32 0.0, %v939
      %v941 = vpop.f32.mrb[0].mxu0
      %v942 = vpop.f32.mrb[0].mxu0
      %v943 = vadd.f32 0.0, %v942
      %v944 = vpop.f32.mrb[0].mxu0
      %945 = vmatprep.mubr.bf16.mxu0 0
      %946 = vmatmul.mubr.bf16.gmra.mrb[0].mxu0 %v872
      %v947 = vpop.f32.mrb[0].mxu0
      %v948 = vadd.f32 0.0, %v947
      %v949 = vpop.f32.mrb[0].mxu0
      %v950 = vpop.f32.mrb[0].mxu0
      %v951 = vadd.f32 0.0, %v950
      %v952 = vpop.f32.mrb[0].mxu0
      %953 = vmatprep.mubr.bf16.mxu0 0
      %954 = vmatmul.mubr.bf16.gmra.mrb[0].mxu0 %v875
      %v955 = vpop.f32.mrb[0].mxu0
      %v956 = vadd.f32 0.0, %v955
      %v957 = vpop.f32.mrb[0].mxu0
      %v958 = vpop.f32.mrb[0].mxu0
      %v959 = vadd.f32 0.0, %v958
      %v960 = vpop.f32.mrb[0].mxu0
      %961 = vmatprep.mubr.bf16.mxu0 0
      %962 = vmatmul.mubr.bf16.gmra.mrb[0].mxu0 %v878
      %v963 = vpop.f32.mrb[0].mxu0
      %v964 = vadd.f32 0.0, %v963
      %v965 = vpop.f32.mrb[0].mxu0
      %v966 = vpop.f32.mrb[0].mxu0
      %v967 = vadd.f32 0.0, %v966
      %v968 = vpop.f32.mrb[0].mxu0
      %969 = vmatprep.mubr.bf16.mxu0 0
      %970 = vmatmul.mubr.bf16.gmra.mrb[0].mxu0 %v881
      %v971 = vpop.f32.mrb[0].mxu0
      %v972 = vadd.f32 0.0, %v971
      %v973 = vpop.f32.mrb[0].mxu0
      %v974 = vpop.f32.mrb[0].mxu0
      %v975 = vadd.f32 0.0, %v974
      %v976 = vpop.f32.mrb[0].mxu0
      %977 = vmatprep.mubr.bf16.mxu0 0
      %978 = vmatmul.mubr.bf16.gmra.mrb[0].mxu0 %v884
      %v979 = vpop.f32.mrb[0].mxu0
      %v980 = vadd.f32 0.0, %v979
      %v981 = vpop.f32.mrb[0].mxu0
      %v982 = vpop.f32.mrb[0].mxu0
      %v983 = vadd.f32 0.0, %v982
      %v984 = vpop.f32.mrb[0].mxu0
      %985 = vmatprep.mubr.bf16.mxu0 0
      %986 = vmatmul.mubr.bf16.gmra.mrb[0].mxu0 %v887
      %v987 = vpop.f32.mrb[0].mxu0
      %v988 = vadd.f32 0.0, %v987
      %v989 = vpop.f32.mrb[0].mxu0
      %v990 = vpop.f32.mrb[0].mxu0
      %v991 = vadd.f32 0.0, %v990
      %v992 = vpop.f32.mrb[0].mxu0
      %993 = vdwg.mxu0
      %v994 = vadd.f32 %v748, %v924
      %v995 = vadd.f32 %v749, %v927
      %v996 = vadd.f32 %v750, %v932
      %v997 = vadd.f32 %v751, %v935
      %v998 = vadd.f32 %v752, %v940
      %v999 = vadd.f32 %v753, %v943
      %v1000 = vadd.f32 %v754, %v948
      %v1001 = vadd.f32 %v755, %v951
      %v1002 = vadd.f32 %v756, %v956
      %v1003 = vadd.f32 %v757, %v959
      %v1004 = vadd.f32 %v758, %v964
      %v1005 = vadd.f32 %v759, %v967
      %v1006 = vadd.f32 %v760, %v972
      %v1007 = vadd.f32 %v761, %v975
      %v1008 = vadd.f32 %v762, %v980
      %v1009 = vadd.f32 %v763, %v983
      %v1010 = vadd.f32 %v764, %v988
      %v1011 = vadd.f32 %v765, %v991
      %v1012 = vld [vmem:[%s165 + $0x4c] sm:$0x3]
      %s1013 = scalar_lea.vmem %s1, 32
      %v1014 = vld [vmem:[%s1013] sm:$0xf]
      %v1015 = vld [vmem:[%s1013 + $0x4] sm:$0xf]
      %v1017 = vunpack.c.l.b16 %v1012
      %v1018 = vpack.c.b16 %v1017, %v1017
      %vm1019 = vsmask.f32 4352
      %v1021 = vshrl.u32 %v826, 16
      %v1023 = vrot.slane %v1021, 3
      %v1024 = vshll.u32 %v826, 16
      %v1026 = vrot.slane %v1024, 4
      %v1027 = vor.u32 %v1023, %v1026
      %v1029 = vshrl.u32 %v827, 16
      %v1031 = vrot.slane %v1029, 3
      %v1032 = vshll.u32 %v827, 16
      %v1034 = vrot.slane %v1032, 4
      %v1035 = vor.u32 %v1031, %v1034
      %v1036 = vsel %vm1019, %v1027, %v1035
      %v1038 = vshrl.u32 %v828, 16
      %v1040 = vrot.slane %v1038, 3
      %v1041 = vshll.u32 %v828, 16
      %v1043 = vrot.slane %v1041, 4
      %v1044 = vor.u32 %v1040, %v1043
      %v1045 = vsel %vm1019, %v1035, %v1044
      %v1047 = vshrl.u32 %v829, 16
      %v1049 = vrot.slane %v1047, 3
      %v1050 = vshll.u32 %v829, 16
      %v1052 = vrot.slane %v1050, 4
      %v1053 = vor.u32 %v1049, %v1052
      %v1054 = vsel %vm1019, %v1044, %v1053
      %v1056 = vshrl.u32 %v830, 16
      %v1058 = vrot.slane %v1056, 3
      %v1059 = vshll.u32 %v830, 16
      %v1061 = vrot.slane %v1059, 4
      %v1062 = vor.u32 %v1058, %v1061
      %v1063 = vsel %vm1019, %v1053, %v1062
      %v1065 = vshrl.u32 %v831, 16
      %v1067 = vrot.slane %v1065, 3
      %v1068 = vshll.u32 %v831, 16
      %v1070 = vrot.slane %v1068, 4
      %v1071 = vor.u32 %v1067, %v1070
      %v1072 = vsel %vm1019, %v1062, %v1071
      %v1074 = vshrl.u32 %v832, 16
      %v1076 = vrot.slane %v1074, 3
      %v1077 = vshll.u32 %v832, 16
      %v1079 = vrot.slane %v1077, 4
      %v1080 = vor.u32 %v1076, %v1079
      %v1081 = vsel %vm1019, %v1071, %v1080
      %v1083 = vshrl.u32 %v833, 16
      %v1085 = vrot.slane %v1083, 3
      %v1086 = vshll.u32 %v833, 16
      %v1088 = vrot.slane %v1086, 4
      %v1089 = vor.u32 %v1085, %v1088
      %v1090 = vsel %vm1019, %v1080, %v1089
      %v1092 = vshrl.u32 %v834, 16
      %v1094 = vrot.slane %v1092, 3
      %v1095 = vshll.u32 %v834, 16
      %v1097 = vrot.slane %v1095, 4
      %v1098 = vor.u32 %v1094, %v1097
      %v1099 = vsel %vm1019, %v1089, %v1098
      %v1101 = vshrl.u32 %v1018, 16
      %v1103 = vrot.slane %v1101, 3
      %v1104 = vshll.u32 %v1018, 16
      %v1106 = vrot.slane %v1104, 4
      %v1107 = vor.u32 %v1103, %v1106
      %v1108 = vsel %vm1019, %v1098, %v1107
      %v1111 = vunpack.c.l.b16 %v1014
      %v1112 = vunpack.c.l.b16 %v1015
      %v1113 = vpack.c.b16 %v1112, %v1111
      %v1116 = vsel %vm319, %v1036, 0
      %v1119 = vsel %vm319, %v1045, 0
      %v1122 = vsel %vm319, %v1054, 0
      %v1125 = vsel %vm319, %v1063, 0
      %v1128 = vsel %vm319, %v1072, 0
      %v1131 = vsel %vm319, %v1081, 0
      %v1134 = vsel %vm319, %v1090, 0
      %v1137 = vsel %vm319, %v1099, 0
      %v1140 = vsel %vm319, %v1108, 0
      %1142 = vmatprep.subr.bf16.mxu0 0
      %1143 = vmatpush1.bf16.msra.mxu0 %v1113
      %1144 = vmatprep.subr.bf16.mxu0 0
      %1145 = vmatpush1.bf16.msra.mxu0 0
      %1146 = vmatprep.subr.bf16.mxu0 0
      %1147 = vmatpush1.bf16.msra.mxu0 0
      %1148 = vmatprep.subr.bf16.mxu0 0
      %1149 = vmatpush1.bf16.msra.mxu0 0
      %1150 = vmatprep.subr.bf16.mxu0 0
      %1151 = vmatpush1.bf16.msra.mxu0 0
      %1152 = vmatprep.subr.bf16.mxu0 0
      %1153 = vmatpush1.bf16.msra.mxu0 0
      %1154 = vmatprep.subr.bf16.mxu0 0
      %1155 = vmatpush1.bf16.msra.mxu0 0
      %1156 = vmatprep.subr.bf16.mxu0 0
      %1157 = vmatpush1.bf16.msra.mxu0 0
      %1158 = vmatprep.subr.bf16.mxu0 0
      %1159 = vmatpush1.bf16.msra.mxu0 0
      %1160 = vmatprep.subr.bf16.mxu0 0
      %1161 = vmatpush1.bf16.msra.mxu0 0
      %1162 = vmatprep.subr.bf16.mxu0 0
      %1163 = vmatpush1.bf16.msra.mxu0 0
      %1164 = vmatprep.subr.bf16.mxu0 0
      %1165 = vmatpush1.bf16.msra.mxu0 0
      %1166 = vmatprep.subr.bf16.mxu0 0
      %1167 = vmatpush1.bf16.msra.mxu0 0
      %1168 = vmatprep.subr.bf16.mxu0 0
      %1169 = vmatpush1.bf16.msra.mxu0 0
      %1170 = vmatprep.subr.bf16.mxu0 0
      %1171 = vmatpush1.bf16.msra.mxu0 0
      %1172 = vmatprep.subr.bf16.mxu0 0
      %1173 = vmatpush1.bf16.msra.mxu0 0
      %1174 = vmatprep.mubr.bf16.mxu0 0
      %1175 = vmatmul.mubr.bf16.gmra.mrb[0].mxu0 %v1116
      %v1176 = vpop.f32.mrb[0].mxu0
      %v1177 = vadd.f32 0.0, %v1176
      %v1178 = vpop.f32.mrb[0].mxu0
      %v1179 = vpop.f32.mrb[0].mxu0
      %v1180 = vadd.f32 0.0, %v1179
      %v1181 = vpop.f32.mrb[0].mxu0
      %1182 = vmatprep.mubr.bf16.mxu0 0
      %1183 = vmatmul.mubr.bf16.gmra.mrb[0].mxu0 %v1119
      %v1184 = vpop.f32.mrb[0].mxu0
      %v1185 = vadd.f32 0.0, %v1184
      %v1186 = vpop.f32.mrb[0].mxu0
      %v1187 = vpop.f32.mrb[0].mxu0
      %v1188 = vadd.f32 0.0, %v1187
      %v1189 = vpop.f32.mrb[0].mxu0
      %1190 = vmatprep.mubr.bf16.mxu0 0
      %1191 = vmatmul.mubr.bf16.gmra.mrb[0].mxu0 %v1122
      %v1192 = vpop.f32.mrb[0].mxu0
      %v1193 = vadd.f32 0.0, %v1192
      %v1194 = vpop.f32.mrb[0].mxu0
      %v1195 = vpop.f32.mrb[0].mxu0
      %v1196 = vadd.f32 0.0, %v1195
      %v1197 = vpop.f32.mrb[0].mxu0
      %1198 = vmatprep.mubr.bf16.mxu0 0
      %1199 = vmatmul.mubr.bf16.gmra.mrb[0].mxu0 %v1125
      %v1200 = vpop.f32.mrb[0].mxu0
      %v1201 = vadd.f32 0.0, %v1200
      %v1202 = vpop.f32.mrb[0].mxu0
      %v1203 = vpop.f32.mrb[0].mxu0
      %v1204 = vadd.f32 0.0, %v1203
      %v1205 = vpop.f32.mrb[0].mxu0
      %1206 = vmatprep.mubr.bf16.mxu0 0
      %1207 = vmatmul.mubr.bf16.gmra.mrb[0].mxu0 %v1128
      %v1208 = vpop.f32.mrb[0].mxu0
      %v1209 = vadd.f32 0.0, %v1208
      %v1210 = vpop.f32.mrb[0].mxu0
      %v1211 = vpop.f32.mrb[0].mxu0
      %v1212 = vadd.f32 0.0, %v1211
      %v1213 = vpop.f32.mrb[0].mxu0
      %1214 = vmatprep.mubr.bf16.mxu0 0
      %1215 = vmatmul.mubr.bf16.gmra.mrb[0].mxu0 %v1131
      %v1216 = vpop.f32.mrb[0].mxu0
      %v1217 = vadd.f32 0.0, %v1216
      %v1218 = vpop.f32.mrb[0].mxu0
      %v1219 = vpop.f32.mrb[0].mxu0
      %v1220 = vadd.f32 0.0, %v1219
      %v1221 = vpop.f32.mrb[0].mxu0
      %1222 = vmatprep.mubr.bf16.mxu0 0
      %1223 = vmatmul.mubr.bf16.gmra.mrb[0].mxu0 %v1134
      %v1224 = vpop.f32.mrb[0].mxu0
      %v1225 = vadd.f32 0.0, %v1224
      %v1226 = vpop.f32.mrb[0].mxu0
      %v1227 = vpop.f32.mrb[0].mxu0
      %v1228 = vadd.f32 0.0, %v1227
      %v1229 = vpop.f32.mrb[0].mxu0
      %1230 = vmatprep.mubr.bf16.mxu0 0
      %1231 = vmatmul.mubr.bf16.gmra.mrb[0].mxu0 %v1137
      %v1232 = vpop.f32.mrb[0].mxu0
      %v1233 = vadd.f32 0.0, %v1232
      %v1234 = vpop.f32.mrb[0].mxu0
      %v1235 = vpop.f32.mrb[0].mxu0
      %v1236 = vadd.f32 0.0, %v1235
      %v1237 = vpop.f32.mrb[0].mxu0
      %1238 = vmatprep.mubr.bf16.mxu0 0
      %1239 = vmatmul.mubr.bf16.gmra.mrb[0].mxu0 %v1140
      %v1240 = vpop.f32.mrb[0].mxu0
      %v1241 = vadd.f32 0.0, %v1240
      %v1242 = vpop.f32.mrb[0].mxu0
      %v1243 = vpop.f32.mrb[0].mxu0
      %v1244 = vadd.f32 0.0, %v1243
      %v1245 = vpop.f32.mrb[0].mxu0
      %1246 = vdwg.mxu0
      %v1247 = vadd.f32 %v994, %v1177
      %v1248 = vadd.f32 %v995, %v1180
      %v1249 = vadd.f32 %v996, %v1185
      %v1250 = vadd.f32 %v997, %v1188
      %v1251 = vadd.f32 %v998, %v1193
      %v1252 = vadd.f32 %v999, %v1196
      %v1253 = vadd.f32 %v1000, %v1201
      %v1254 = vadd.f32 %v1001, %v1204
      %v1255 = vadd.f32 %v1002, %v1209
      %v1256 = vadd.f32 %v1003, %v1212
      %v1257 = vadd.f32 %v1004, %v1217
      %v1258 = vadd.f32 %v1005, %v1220
      %v1259 = vadd.f32 %v1006, %v1225
      %v1260 = vadd.f32 %v1007, %v1228
      %v1261 = vadd.f32 %v1008, %v1233
      %v1262 = vadd.f32 %v1009, %v1236
      %v1263 = vadd.f32 %v1010, %v1241
      %v1264 = vadd.f32 %v1011, %v1244
      %s1265 = scalar_lea.vmem %s1, 40
      %v1266 = vld [vmem:[%s1265] sm:$0xf]
      %v1267 = vld [vmem:[%s1265 + $0x4] sm:$0xf]
      %v1268 = vpack.c.b16 %v809, %v808
      %v1269 = vpack.c.b16 %v811, %v810
      %v1270 = vpack.c.b16 %v813, %v812
      %v1271 = vpack.c.b16 %v815, %v814
      %v1272 = vpack.c.b16 %v817, %v816
      %v1273 = vpack.c.b16 %v819, %v818
      %v1274 = vpack.c.b16 %v821, %v820
      %v1275 = vpack.c.b16 %v823, %v822
      %v1276 = vpack.c.b16 %v1017, %v824
      %v1279 = vunpack.c.l.b16 %v1266
      %v1280 = vunpack.c.l.b16 %v1267
      %v1281 = vpack.c.b16 %v1280, %v1279
      %v1284 = vsel %vm319, %v1268, 0
      %v1287 = vsel %vm319, %v1269, 0
      %v1290 = vsel %vm319, %v1270, 0
      %v1293 = vsel %vm319, %v1271, 0
      %v1296 = vsel %vm319, %v1272, 0
      %v1299 = vsel %vm319, %v1273, 0
      %v1302 = vsel %vm319, %v1274, 0
      %v1305 = vsel %vm319, %v1275, 0
      %v1308 = vsel %vm319, %v1276, 0
      %1310 = vmatprep.subr.bf16.mxu0 0
      %1311 = vmatpush1.bf16.msra.mxu0 %v1281
      %1312 = vmatprep.subr.bf16.mxu0 0
      %1313 = vmatpush1.bf16.msra.mxu0 0
      %1314 = vmatprep.subr.bf16.mxu0 0
      %1315 = vmatpush1.bf16.msra.mxu0 0
      %1316 = vmatprep.subr.bf16.mxu0 0
      %1317 = vmatpush1.bf16.msra.mxu0 0
      %1318 = vmatprep.subr.bf16.mxu0 0
      %1319 = vmatpush1.bf16.msra.mxu0 0
      %1320 = vmatprep.subr.bf16.mxu0 0
      %1321 = vmatpush1.bf16.msra.mxu0 0
      %1322 = vmatprep.subr.bf16.mxu0 0
      %1323 = vmatpush1.bf16.msra.mxu0 0
      %1324 = vmatprep.subr.bf16.mxu0 0
      %1325 = vmatpush1.bf16.msra.mxu0 0
      %1326 = vmatprep.subr.bf16.mxu0 0
      %1327 = vmatpush1.bf16.msra.mxu0 0
      %1328 = vmatprep.subr.bf16.mxu0 0
      %1329 = vmatpush1.bf16.msra.mxu0 0
      %1330 = vmatprep.subr.bf16.mxu0 0
      %1331 = vmatpush1.bf16.msra.mxu0 0
      %1332 = vmatprep.subr.bf16.mxu0 0
      %1333 = vmatpush1.bf16.msra.mxu0 0
      %1334 = vmatprep.subr.bf16.mxu0 0
      %1335 = vmatpush1.bf16.msra.mxu0 0
      %1336 = vmatprep.subr.bf16.mxu0 0
      %1337 = vmatpush1.bf16.msra.mxu0 0
      %1338 = vmatprep.subr.bf16.mxu0 0
      %1339 = vmatpush1.bf16.msra.mxu0 0
      %1340 = vmatprep.subr.bf16.mxu0 0
      %1341 = vmatpush1.bf16.msra.mxu0 0
      %1342 = vmatprep.mubr.bf16.mxu0 0
      %1343 = vmatmul.mubr.bf16.gmra.mrb[0].mxu0 %v1284
      %v1344 = vpop.f32.mrb[0].mxu0
      %v1345 = vadd.f32 0.0, %v1344
      %v1346 = vpop.f32.mrb[0].mxu0
      %v1347 = vpop.f32.mrb[0].mxu0
      %v1348 = vadd.f32 0.0, %v1347
      %v1349 = vpop.f32.mrb[0].mxu0
      %1350 = vmatprep.mubr.bf16.mxu0 0
      %1351 = vmatmul.mubr.bf16.gmra.mrb[0].mxu0 %v1287
      %v1352 = vpop.f32.mrb[0].mxu0
      %v1353 = vadd.f32 0.0, %v1352
      %v1354 = vpop.f32.mrb[0].mxu0
      %v1355 = vpop.f32.mrb[0].mxu0
      %v1356 = vadd.f32 0.0, %v1355
      %v1357 = vpop.f32.mrb[0].mxu0
      %1358 = vmatprep.mubr.bf16.mxu0 0
      %1359 = vmatmul.mubr.bf16.gmra.mrb[0].mxu0 %v1290
      %v1360 = vpop.f32.mrb[0].mxu0
      %v1361 = vadd.f32 0.0, %v1360
      %v1362 = vpop.f32.mrb[0].mxu0
      %v1363 = vpop.f32.mrb[0].mxu0
      %v1364 = vadd.f32 0.0, %v1363
      %v1365 = vpop.f32.mrb[0].mxu0
      %1366 = vmatprep.mubr.bf16.mxu0 0
      %1367 = vmatmul.mubr.bf16.gmra.mrb[0].mxu0 %v1293
      %v1368 = vpop.f32.mrb[0].mxu0
      %v1369 = vadd.f32 0.0, %v1368
      %v1370 = vpop.f32.mrb[0].mxu0
      %v1371 = vpop.f32.mrb[0].mxu0
      %v1372 = vadd.f32 0.0, %v1371
      %v1373 = vpop.f32.mrb[0].mxu0
      %1374 = vmatprep.mubr.bf16.mxu0 0
      %1375 = vmatmul.mubr.bf16.gmra.mrb[0].mxu0 %v1296
      %v1376 = vpop.f32.mrb[0].mxu0
      %v1377 = vadd.f32 0.0, %v1376
      %v1378 = vpop.f32.mrb[0].mxu0
      %v1379 = vpop.f32.mrb[0].mxu0
      %v1380 = vadd.f32 0.0, %v1379
      %v1381 = vpop.f32.mrb[0].mxu0
      %1382 = vmatprep.mubr.bf16.mxu0 0
      %1383 = vmatmul.mubr.bf16.gmra.mrb[0].mxu0 %v1299
      %v1384 = vpop.f32.mrb[0].mxu0
      %v1385 = vadd.f32 0.0, %v1384
      %v1386 = vpop.f32.mrb[0].mxu0
      %v1387 = vpop.f32.mrb[0].mxu0
      %v1388 = vadd.f32 0.0, %v1387
      %v1389 = vpop.f32.mrb[0].mxu0
      %1390 = vmatprep.mubr.bf16.mxu0 0
      %1391 = vmatmul.mubr.bf16.gmra.mrb[0].mxu0 %v1302
      %v1392 = vpop.f32.mrb[0].mxu0
      %v1393 = vadd.f32 0.0, %v1392
      %v1394 = vpop.f32.mrb[0].mxu0
      %v1395 = vpop.f32.mrb[0].mxu0
      %v1396 = vadd.f32 0.0, %v1395
      %v1397 = vpop.f32.mrb[0].mxu0
      %1398 = vmatprep.mubr.bf16.mxu0 0
      %1399 = vmatmul.mubr.bf16.gmra.mrb[0].mxu0 %v1305
      %v1400 = vpop.f32.mrb[0].mxu0
      %v1401 = vadd.f32 0.0, %v1400
      %v1402 = vpop.f32.mrb[0].mxu0
      %v1403 = vpop.f32.mrb[0].mxu0
      %v1404 = vadd.f32 0.0, %v1403
      %v1405 = vpop.f32.mrb[0].mxu0
      %1406 = vmatprep.mubr.bf16.mxu0 0
      %1407 = vmatmul.mubr.bf16.gmra.mrb[0].mxu0 %v1308
      %v1408 = vpop.f32.mrb[0].mxu0
      %v1409 = vadd.f32 0.0, %v1408
      %v1410 = vpop.f32.mrb[0].mxu0
      %v1411 = vpop.f32.mrb[0].mxu0
      %v1412 = vadd.f32 0.0, %v1411
      %v1413 = vpop.f32.mrb[0].mxu0
      %1414 = vdwg.mxu0
      %v1415 = vadd.f32 %v1247, %v1345
      %v1416 = vadd.f32 %v1248, %v1348
      %v1417 = vadd.f32 %v1249, %v1353
      %v1418 = vadd.f32 %v1250, %v1356
      %v1419 = vadd.f32 %v1251, %v1361
      %v1420 = vadd.f32 %v1252, %v1364
      %v1421 = vadd.f32 %v1253, %v1369
      %v1422 = vadd.f32 %v1254, %v1372
      %v1423 = vadd.f32 %v1255, %v1377
      %v1424 = vadd.f32 %v1256, %v1380
      %v1425 = vadd.f32 %v1257, %v1385
      %v1426 = vadd.f32 %v1258, %v1388
      %v1427 = vadd.f32 %v1259, %v1393
      %v1428 = vadd.f32 %v1260, %v1396
      %v1429 = vadd.f32 %v1261, %v1401
      %v1430 = vadd.f32 %v1262, %v1404
      %v1431 = vadd.f32 %v1263, %v1409
      %v1432 = vadd.f32 %v1264, %v1412
      %v1433 = vld [vmem:[%s165 + $0xc] sm:$0xc]
      %v1434 = vld [vmem:[%s165 + $0x10] sm:$0xf]
      %v1435 = vld [vmem:[%s165 + $0x14] sm:$0xf]
      %v1436 = vld [vmem:[%s165 + $0x18] sm:$0xf]
      %v1437 = vld [vmem:[%s165 + $0x1c] sm:$0xf]
      %v1438 = vld [vmem:[%s165 + $0x20] sm:$0xf]
      %v1439 = vld [vmem:[%s165 + $0x24] sm:$0xf]
      %v1440 = vld [vmem:[%s165 + $0x28] sm:$0xf]
      %v1441 = vld [vmem:[%s165 + $0x2c] sm:$0xf]
      %v1442 = vld [vmem:[%s165 + $0x30] sm:$0xf]
      %v1443 = vld [vmem:[%s165 + $0x34] sm:$0xf]
      %v1444 = vld [vmem:[%s165 + $0x38] sm:$0xf]
      %v1445 = vld [vmem:[%s165 + $0x3c] sm:$0xf]
      %v1446 = vld [vmem:[%s165 + $0x40] sm:$0xf]
      %v1447 = vld [vmem:[%s165 + $0x44] sm:$0xf]
      %v1448 = vld [vmem:[%s165 + $0x48] sm:$0xf]
      %v1449 = vld [vmem:[%s165 + $0x4c] sm:$0xf]
      %v1450 = vld [vmem:[%s165 + $0x50] sm:$0xf]
      %s1451 = scalar_lea.vmem %s1, 48
      %v1452 = vld [vmem:[%s1451] sm:$0xf]
      %v1453 = vld [vmem:[%s1451 + $0x4] sm:$0xf]
      %v1472 = vunpack.c.l.b16 %v1433
      %v1473 = vunpack.c.l.b16 %v1434
      %v1474 = vunpack.c.l.b16 %v1435
      %v1475 = vunpack.c.l.b16 %v1436
      %v1476 = vunpack.c.l.b16 %v1437
      %v1477 = vunpack.c.l.b16 %v1438
      %v1478 = vunpack.c.l.b16 %v1439
      %v1479 = vunpack.c.l.b16 %v1440
      %v1480 = vunpack.c.l.b16 %v1441
      %v1481 = vunpack.c.l.b16 %v1442
      %v1482 = vunpack.c.l.b16 %v1443
      %v1483 = vunpack.c.l.b16 %v1444
      %v1484 = vunpack.c.l.b16 %v1445
      %v1485 = vunpack.c.l.b16 %v1446
      %v1486 = vunpack.c.l.b16 %v1447
      %v1487 = vunpack.c.l.b16 %v1448
      %v1488 = vunpack.c.l.b16 %v1449
      %v1489 = vunpack.c.l.b16 %v1450
      %v1490 = vpack.c.b16 %v1473, %v1472
      %v1491 = vpack.c.b16 %v1475, %v1474
      %v1492 = vpack.c.b16 %v1477, %v1476
      %v1493 = vpack.c.b16 %v1479, %v1478
      %v1494 = vpack.c.b16 %v1481, %v1480
      %v1495 = vpack.c.b16 %v1483, %v1482
      %v1496 = vpack.c.b16 %v1485, %v1484
      %v1497 = vpack.c.b16 %v1487, %v1486
      %v1498 = vpack.c.b16 %v1489, %v1488
      %vm1499 = vcmask 1045504
      %v1500 = vrot.slane %v1490, 2
      %v1501 = vrot.slane %v1491, 2
      %v1502 = vsel %vm1499, %v1500, %v1501
      %v1503 = vrot.slane %v1492, 2
      %v1504 = vsel %vm1499, %v1501, %v1503
      %v1505 = vrot.slane %v1493, 2
      %v1506 = vsel %vm1499, %v1503, %v1505
      %v1507 = vrot.slane %v1494, 2
      %v1508 = vsel %vm1499, %v1505, %v1507
      %v1509 = vrot.slane %v1495, 2
      %v1510 = vsel %vm1499, %v1507, %v1509
      %v1511 = vrot.slane %v1496, 2
      %v1512 = vsel %vm1499, %v1509, %v1511
      %v1513 = vrot.slane %v1497, 2
      %v1514 = vsel %vm1499, %v1511, %v1513
      %v1515 = vrot.slane %v1498, 2
      %v1516 = vsel %vm1499, %v1513, %v1515
      %v1519 = vunpack.c.l.b16 %v1452
      %v1520 = vunpack.c.l.b16 %v1453
      %v1521 = vpack.c.b16 %v1520, %v1519
      %v1524 = vsel %vm319, %v1502, 0
      %v1527 = vsel %vm319, %v1504, 0
      %v1530 = vsel %vm319, %v1506, 0
      %v1533 = vsel %vm319, %v1508, 0
      %v1536 = vsel %vm319, %v1510, 0
      %v1539 = vsel %vm319, %v1512, 0
      %v1542 = vsel %vm319, %v1514, 0
      %v1545 = vsel %vm319, %v1516, 0
      %v1548 = vsel %vm319, %v1515, 0
      %1550 = vmatprep.subr.bf16.mxu0 0
      %1551 = vmatpush1.bf16.msra.mxu0 %v1521
      %1552 = vmatprep.subr.bf16.mxu0 0
      %1553 = vmatpush1.bf16.msra.mxu0 0
      %1554 = vmatprep.subr.bf16.mxu0 0
      %1555 = vmatpush1.bf16.msra.mxu0 0
      %1556 = vmatprep.subr.bf16.mxu0 0
      %1557 = vmatpush1.bf16.msra.mxu0 0
      %1558 = vmatprep.subr.bf16.mxu0 0
      %1559 = vmatpush1.bf16.msra.mxu0 0
      %1560 = vmatprep.subr.bf16.mxu0 0
      %1561 = vmatpush1.bf16.msra.mxu0 0
      %1562 = vmatprep.subr.bf16.mxu0 0
      %1563 = vmatpush1.bf16.msra.mxu0 0
      %1564 = vmatprep.subr.bf16.mxu0 0
      %1565 = vmatpush1.bf16.msra.mxu0 0
      %1566 = vmatprep.subr.bf16.mxu0 0
      %1567 = vmatpush1.bf16.msra.mxu0 0
      %1568 = vmatprep.subr.bf16.mxu0 0
      %1569 = vmatpush1.bf16.msra.mxu0 0
      %1570 = vmatprep.subr.bf16.mxu0 0
      %1571 = vmatpush1.bf16.msra.mxu0 0
      %1572 = vmatprep.subr.bf16.mxu0 0
      %1573 = vmatpush1.bf16.msra.mxu0 0
      %1574 = vmatprep.subr.bf16.mxu0 0
      %1575 = vmatpush1.bf16.msra.mxu0 0
      %1576 = vmatprep.subr.bf16.mxu0 0
      %1577 = vmatpush1.bf16.msra.mxu0 0
      %1578 = vmatprep.subr.bf16.mxu0 0
      %1579 = vmatpush1.bf16.msra.mxu0 0
      %1580 = vmatprep.subr.bf16.mxu0 0
      %1581 = vmatpush1.bf16.msra.mxu0 0
      %1582 = vmatprep.mubr.bf16.mxu0 0
      %1583 = vmatmul.mubr.bf16.gmra.mrb[0].mxu0 %v1524
      %v1584 = vpop.f32.mrb[0].mxu0
      %v1585 = vadd.f32 0.0, %v1584
      %v1586 = vpop.f32.mrb[0].mxu0
      %v1587 = vpop.f32.mrb[0].mxu0
      %v1588 = vadd.f32 0.0, %v1587
      %v1589 = vpop.f32.mrb[0].mxu0
      %1590 = vmatprep.mubr.bf16.mxu0 0
      %1591 = vmatmul.mubr.bf16.gmra.mrb[0].mxu0 %v1527
      %v1592 = vpop.f32.mrb[0].mxu0
      %v1593 = vadd.f32 0.0, %v1592
      %v1594 = vpop.f32.mrb[0].mxu0
      %v1595 = vpop.f32.mrb[0].mxu0
      %v1596 = vadd.f32 0.0, %v1595
      %v1597 = vpop.f32.mrb[0].mxu0
      %1598 = vmatprep.mubr.bf16.mxu0 0
      %1599 = vmatmul.mubr.bf16.gmra.mrb[0].mxu0 %v1530
      %v1600 = vpop.f32.mrb[0].mxu0
      %v1601 = vadd.f32 0.0, %v1600
      %v1602 = vpop.f32.mrb[0].mxu0
      %v1603 = vpop.f32.mrb[0].mxu0
      %v1604 = vadd.f32 0.0, %v1603
      %v1605 = vpop.f32.mrb[0].mxu0
      %1606 = vmatprep.mubr.bf16.mxu0 0
      %1607 = vmatmul.mubr.bf16.gmra.mrb[0].mxu0 %v1533
      %v1608 = vpop.f32.mrb[0].mxu0
      %v1609 = vadd.f32 0.0, %v1608
      %v1610 = vpop.f32.mrb[0].mxu0
      %v1611 = vpop.f32.mrb[0].mxu0
      %v1612 = vadd.f32 0.0, %v1611
      %v1613 = vpop.f32.mrb[0].mxu0
      %1614 = vmatprep.mubr.bf16.mxu0 0
      %1615 = vmatmul.mubr.bf16.gmra.mrb[0].mxu0 %v1536
      %v1616 = vpop.f32.mrb[0].mxu0
      %v1617 = vadd.f32 0.0, %v1616
      %v1618 = vpop.f32.mrb[0].mxu0
      %v1619 = vpop.f32.mrb[0].mxu0
      %v1620 = vadd.f32 0.0, %v1619
      %v1621 = vpop.f32.mrb[0].mxu0
      %1622 = vmatprep.mubr.bf16.mxu0 0
      %1623 = vmatmul.mubr.bf16.gmra.mrb[0].mxu0 %v1539
      %v1624 = vpop.f32.mrb[0].mxu0
      %v1625 = vadd.f32 0.0, %v1624
      %v1626 = vpop.f32.mrb[0].mxu0
      %v1627 = vpop.f32.mrb[0].mxu0
      %v1628 = vadd.f32 0.0, %v1627
      %v1629 = vpop.f32.mrb[0].mxu0
      %1630 = vmatprep.mubr.bf16.mxu0 0
      %1631 = vmatmul.mubr.bf16.gmra.mrb[0].mxu0 %v1542
      %v1632 = vpop.f32.mrb[0].mxu0
      %v1633 = vadd.f32 0.0, %v1632
      %v1634 = vpop.f32.mrb[0].mxu0
      %v1635 = vpop.f32.mrb[0].mxu0
      %v1636 = vadd.f32 0.0, %v1635
      %v1637 = vpop.f32.mrb[0].mxu0
      %1638 = vmatprep.mubr.bf16.mxu0 0
      %1639 = vmatmul.mubr.bf16.gmra.mrb[0].mxu0 %v1545
      %v1640 = vpop.f32.mrb[0].mxu0
      %v1641 = vadd.f32 0.0, %v1640
      %v1642 = vpop.f32.mrb[0].mxu0
      %v1643 = vpop.f32.mrb[0].mxu0
      %v1644 = vadd.f32 0.0, %v1643
      %v1645 = vpop.f32.mrb[0].mxu0
      %1646 = vmatprep.mubr.bf16.mxu0 0
      %1647 = vmatmul.mubr.bf16.gmra.mrb[0].mxu0 %v1548
      %v1648 = vpop.f32.mrb[0].mxu0
      %v1649 = vadd.f32 0.0, %v1648
      %v1650 = vpop.f32.mrb[0].mxu0
      %v1651 = vpop.f32.mrb[0].mxu0
      %v1652 = vadd.f32 0.0, %v1651
      %v1653 = vpop.f32.mrb[0].mxu0
      %1654 = vdwg.mxu0
      %v1655 = vadd.f32 %v1415, %v1585
      %v1656 = vadd.f32 %v1416, %v1588
      %v1657 = vadd.f32 %v1417, %v1593
      %v1658 = vadd.f32 %v1418, %v1596
      %v1659 = vadd.f32 %v1419, %v1601
      %v1660 = vadd.f32 %v1420, %v1604
      %v1661 = vadd.f32 %v1421, %v1609
      %v1662 = vadd.f32 %v1422, %v1612
      %v1663 = vadd.f32 %v1423, %v1617
      %v1664 = vadd.f32 %v1424, %v1620
      %v1665 = vadd.f32 %v1425, %v1625
      %v1666 = vadd.f32 %v1426, %v1628
      %v1667 = vadd.f32 %v1427, %v1633
      %v1668 = vadd.f32 %v1428, %v1636
      %v1669 = vadd.f32 %v1429, %v1641
      %v1670 = vadd.f32 %v1430, %v1644
      %v1671 = vadd.f32 %v1431, %v1649
      %v1672 = vadd.f32 %v1432, %v1652
      %v1673 = vld [vmem:[%s165 + $0xc] sm:$0xc]
      %v1674 = vld [vmem:[%s165 + $0x10] sm:$0xf]
      %v1675 = vld [vmem:[%s165 + $0x14] sm:$0xf]
      %v1676 = vld [vmem:[%s165 + $0x18] sm:$0xf]
      %v1677 = vld [vmem:[%s165 + $0x1c] sm:$0xf]
      %v1678 = vld [vmem:[%s165 + $0x20] sm:$0xf]
      %v1679 = vld [vmem:[%s165 + $0x24] sm:$0xf]
      %v1680 = vld [vmem:[%s165 + $0x28] sm:$0xf]
      %v1681 = vld [vmem:[%s165 + $0x2c] sm:$0xf]
      %v1682 = vld [vmem:[%s165 + $0x30] sm:$0xf]
      %v1683 = vld [vmem:[%s165 + $0x34] sm:$0xf]
      %v1684 = vld [vmem:[%s165 + $0x38] sm:$0xf]
      %v1685 = vld [vmem:[%s165 + $0x3c] sm:$0xf]
      %v1686 = vld [vmem:[%s165 + $0x40] sm:$0xf]
      %v1687 = vld [vmem:[%s165 + $0x44] sm:$0xf]
      %v1688 = vld [vmem:[%s165 + $0x48] sm:$0xf]
      %v1689 = vld [vmem:[%s165 + $0x4c] sm:$0xf]
      %v1690 = vld [vmem:[%s165 + $0x50] sm:$0xf]
      %v1691 = vld [vmem:[%s165 + $0x54] sm:$0x1]
      %s1692 = scalar_lea.vmem %s1, 56
      %v1693 = vld [vmem:[%s1692] sm:$0xf]
      %v1694 = vld [vmem:[%s1692 + $0x4] sm:$0xf]
      %v1714 = vunpack.c.l.b16 %v1673
      %v1715 = vunpack.c.l.b16 %v1674
      %v1716 = vunpack.c.l.b16 %v1675
      %v1717 = vunpack.c.l.b16 %v1676
      %v1718 = vunpack.c.l.b16 %v1677
      %v1719 = vunpack.c.l.b16 %v1678
      %v1720 = vunpack.c.l.b16 %v1679
      %v1721 = vunpack.c.l.b16 %v1680
      %v1722 = vunpack.c.l.b16 %v1681
      %v1723 = vunpack.c.l.b16 %v1682
      %v1724 = vunpack.c.l.b16 %v1683
      %v1725 = vunpack.c.l.b16 %v1684
      %v1726 = vunpack.c.l.b16 %v1685
      %v1727 = vunpack.c.l.b16 %v1686
      %v1728 = vunpack.c.l.b16 %v1687
      %v1729 = vunpack.c.l.b16 %v1688
      %v1730 = vunpack.c.l.b16 %v1689
      %v1731 = vunpack.c.l.b16 %v1690
      %v1732 = vunpack.c.l.b16 %v1691
      %v1733 = vpack.c.b16 %v1715, %v1714
      %v1734 = vpack.c.b16 %v1717, %v1716
      %v1735 = vpack.c.b16 %v1719, %v1718
      %v1736 = vpack.c.b16 %v1721, %v1720
      %v1737 = vpack.c.b16 %v1723, %v1722
      %v1738 = vpack.c.b16 %v1725, %v1724
      %v1739 = vpack.c.b16 %v1727, %v1726
      %v1740 = vpack.c.b16 %v1729, %v1728
      %v1741 = vpack.c.b16 %v1731, %v1730
      %v1742 = vpack.c.b16 %v1732, %v1732
      %vm1743 = vsmask.f32 5376
      %v1745 = vshrl.u32 %v1733, 16
      %v1747 = vrot.slane %v1745, 2
      %v1748 = vshll.u32 %v1733, 16
      %v1750 = vrot.slane %v1748, 3
      %v1751 = vor.u32 %v1747, %v1750
      %v1753 = vshrl.u32 %v1734, 16
      %v1755 = vrot.slane %v1753, 2
      %v1756 = vshll.u32 %v1734, 16
      %v1758 = vrot.slane %v1756, 3
      %v1759 = vor.u32 %v1755, %v1758
      %v1760 = vsel %vm1743, %v1751, %v1759
      %v1762 = vshrl.u32 %v1735, 16
      %v1764 = vrot.slane %v1762, 2
      %v1765 = vshll.u32 %v1735, 16
      %v1767 = vrot.slane %v1765, 3
      %v1768 = vor.u32 %v1764, %v1767
      %v1769 = vsel %vm1743, %v1759, %v1768
      %v1771 = vshrl.u32 %v1736, 16
      %v1773 = vrot.slane %v1771, 2
      %v1774 = vshll.u32 %v1736, 16
      %v1776 = vrot.slane %v1774, 3
      %v1777 = vor.u32 %v1773, %v1776
      %v1778 = vsel %vm1743, %v1768, %v1777
      %v1780 = vshrl.u32 %v1737, 16
      %v1782 = vrot.slane %v1780, 2
      %v1783 = vshll.u32 %v1737, 16
      %v1785 = vrot.slane %v1783, 3
      %v1786 = vor.u32 %v1782, %v1785
      %v1787 = vsel %vm1743, %v1777, %v1786
      %v1789 = vshrl.u32 %v1738, 16
      %v1791 = vrot.slane %v1789, 2
      %v1792 = vshll.u32 %v1738, 16
      %v1794 = vrot.slane %v1792, 3
      %v1795 = vor.u32 %v1791, %v1794
      %v1796 = vsel %vm1743, %v1786, %v1795
      %v1798 = vshrl.u32 %v1739, 16
      %v1800 = vrot.slane %v1798, 2
      %v1801 = vshll.u32 %v1739, 16
      %v1803 = vrot.slane %v1801, 3
      %v1804 = vor.u32 %v1800, %v1803
      %v1805 = vsel %vm1743, %v1795, %v1804
      %v1807 = vshrl.u32 %v1740, 16
      %v1809 = vrot.slane %v1807, 2
      %v1810 = vshll.u32 %v1740, 16
      %v1812 = vrot.slane %v1810, 3
      %v1813 = vor.u32 %v1809, %v1812
      %v1814 = vsel %vm1743, %v1804, %v1813
      %v1816 = vshrl.u32 %v1741, 16
      %v1818 = vrot.slane %v1816, 2
      %v1819 = vshll.u32 %v1741, 16
      %v1821 = vrot.slane %v1819, 3
      %v1822 = vor.u32 %v1818, %v1821
      %v1823 = vsel %vm1743, %v1813, %v1822
      %v1825 = vshll.u32 %v1742, 16
      %v1827 = vrot.slane %v1825, 3
      %v1828 = vsel %vm1743, %v1822, %v1827
      %v1831 = vunpack.c.l.b16 %v1693
      %v1832 = vunpack.c.l.b16 %v1694
      %v1833 = vpack.c.b16 %v1832, %v1831
      %v1836 = vsel %vm319, %v1760, 0
      %v1839 = vsel %vm319, %v1769, 0
      %v1842 = vsel %vm319, %v1778, 0
      %v1845 = vsel %vm319, %v1787, 0
      %v1848 = vsel %vm319, %v1796, 0
      %v1851 = vsel %vm319, %v1805, 0
      %v1854 = vsel %vm319, %v1814, 0
      %v1857 = vsel %vm319, %v1823, 0
      %v1860 = vsel %vm319, %v1828, 0
      %1862 = vmatprep.subr.bf16.mxu0 0
      %1863 = vmatpush1.bf16.msra.mxu0 %v1833
      %1864 = vmatprep.subr.bf16.mxu0 0
      %1865 = vmatpush1.bf16.msra.mxu0 0
      %1866 = vmatprep.subr.bf16.mxu0 0
      %1867 = vmatpush1.bf16.msra.mxu0 0
      %1868 = vmatprep.subr.bf16.mxu0 0
      %1869 = vmatpush1.bf16.msra.mxu0 0
      %1870 = vmatprep.subr.bf16.mxu0 0
      %1871 = vmatpush1.bf16.msra.mxu0 0
      %1872 = vmatprep.subr.bf16.mxu0 0
      %1873 = vmatpush1.bf16.msra.mxu0 0
      %1874 = vmatprep.subr.bf16.mxu0 0
      %1875 = vmatpush1.bf16.msra.mxu0 0
      %1876 = vmatprep.subr.bf16.mxu0 0
      %1877 = vmatpush1.bf16.msra.mxu0 0
      %1878 = vmatprep.subr.bf16.mxu0 0
      %1879 = vmatpush1.bf16.msra.mxu0 0
      %1880 = vmatprep.subr.bf16.mxu0 0
      %1881 = vmatpush1.bf16.msra.mxu0 0
      %1882 = vmatprep.subr.bf16.mxu0 0
      %1883 = vmatpush1.bf16.msra.mxu0 0
      %1884 = vmatprep.subr.bf16.mxu0 0
      %1885 = vmatpush1.bf16.msra.mxu0 0
      %1886 = vmatprep.subr.bf16.mxu0 0
      %1887 = vmatpush1.bf16.msra.mxu0 0
      %1888 = vmatprep.subr.bf16.mxu0 0
      %1889 = vmatpush1.bf16.msra.mxu0 0
      %1890 = vmatprep.subr.bf16.mxu0 0
      %1891 = vmatpush1.bf16.msra.mxu0 0
      %1892 = vmatprep.subr.bf16.mxu0 0
      %1893 = vmatpush1.bf16.msra.mxu0 0
      %1894 = vmatprep.mubr.bf16.mxu0 0
      %1895 = vmatmul.mubr.bf16.gmra.mrb[0].mxu0 %v1836
      %v1896 = vpop.f32.mrb[0].mxu0
      %v1897 = vadd.f32 0.0, %v1896
      %v1898 = vpop.f32.mrb[0].mxu0
      %v1899 = vpop.f32.mrb[0].mxu0
      %v1900 = vadd.f32 0.0, %v1899
      %v1901 = vpop.f32.mrb[0].mxu0
      %1902 = vmatprep.mubr.bf16.mxu0 0
      %1903 = vmatmul.mubr.bf16.gmra.mrb[0].mxu0 %v1839
      %v1904 = vpop.f32.mrb[0].mxu0
      %v1905 = vadd.f32 0.0, %v1904
      %v1906 = vpop.f32.mrb[0].mxu0
      %v1907 = vpop.f32.mrb[0].mxu0
      %v1908 = vadd.f32 0.0, %v1907
      %v1909 = vpop.f32.mrb[0].mxu0
      %1910 = vmatprep.mubr.bf16.mxu0 0
      %1911 = vmatmul.mubr.bf16.gmra.mrb[0].mxu0 %v1842
      %v1912 = vpop.f32.mrb[0].mxu0
      %v1913 = vadd.f32 0.0, %v1912
      %v1914 = vpop.f32.mrb[0].mxu0
      %v1915 = vpop.f32.mrb[0].mxu0
      %v1916 = vadd.f32 0.0, %v1915
      %v1917 = vpop.f32.mrb[0].mxu0
      %1918 = vmatprep.mubr.bf16.mxu0 0
      %1919 = vmatmul.mubr.bf16.gmra.mrb[0].mxu0 %v1845
      %v1920 = vpop.f32.mrb[0].mxu0
      %v1921 = vadd.f32 0.0, %v1920
      %v1922 = vpop.f32.mrb[0].mxu0
      %v1923 = vpop.f32.mrb[0].mxu0
      %v1924 = vadd.f32 0.0, %v1923
      %v1925 = vpop.f32.mrb[0].mxu0
      %1926 = vmatprep.mubr.bf16.mxu0 0
      %1927 = vmatmul.mubr.bf16.gmra.mrb[0].mxu0 %v1848
      %v1928 = vpop.f32.mrb[0].mxu0
      %v1929 = vadd.f32 0.0, %v1928
      %v1930 = vpop.f32.mrb[0].mxu0
      %v1931 = vpop.f32.mrb[0].mxu0
      %v1932 = vadd.f32 0.0, %v1931
      %v1933 = vpop.f32.mrb[0].mxu0
      %1934 = vmatprep.mubr.bf16.mxu0 0
      %1935 = vmatmul.mubr.bf16.gmra.mrb[0].mxu0 %v1851
      %v1936 = vpop.f32.mrb[0].mxu0
      %v1937 = vadd.f32 0.0, %v1936
      %v1938 = vpop.f32.mrb[0].mxu0
      %v1939 = vpop.f32.mrb[0].mxu0
      %v1940 = vadd.f32 0.0, %v1939
      %v1941 = vpop.f32.mrb[0].mxu0
      %1942 = vmatprep.mubr.bf16.mxu0 0
      %1943 = vmatmul.mubr.bf16.gmra.mrb[0].mxu0 %v1854
      %v1944 = vpop.f32.mrb[0].mxu0
      %v1945 = vadd.f32 0.0, %v1944
      %v1946 = vpop.f32.mrb[0].mxu0
      %v1947 = vpop.f32.mrb[0].mxu0
      %v1948 = vadd.f32 0.0, %v1947
      %v1949 = vpop.f32.mrb[0].mxu0
      %1950 = vmatprep.mubr.bf16.mxu0 0
      %1951 = vmatmul.mubr.bf16.gmra.mrb[0].mxu0 %v1857
      %v1952 = vpop.f32.mrb[0].mxu0
      %v1953 = vadd.f32 0.0, %v1952
      %v1954 = vpop.f32.mrb[0].mxu0
      %v1955 = vpop.f32.mrb[0].mxu0
      %v1956 = vadd.f32 0.0, %v1955
      %v1957 = vpop.f32.mrb[0].mxu0
      %1958 = vmatprep.mubr.bf16.mxu0 0
      %1959 = vmatmul.mubr.bf16.gmra.mrb[0].mxu0 %v1860
      %v1960 = vpop.f32.mrb[0].mxu0
      %v1961 = vadd.f32 0.0, %v1960
      %v1962 = vpop.f32.mrb[0].mxu0
      %v1963 = vpop.f32.mrb[0].mxu0
      %v1964 = vadd.f32 0.0, %v1963
      %v1965 = vpop.f32.mrb[0].mxu0
      %1966 = vdwg.mxu0
      %v1967 = vadd.f32 %v1655, %v1897
      %v1968 = vadd.f32 %v1656, %v1900
      %v1969 = vadd.f32 %v1657, %v1905
      %v1970 = vadd.f32 %v1658, %v1908
      %v1971 = vadd.f32 %v1659, %v1913
      %v1972 = vadd.f32 %v1660, %v1916
      %v1973 = vadd.f32 %v1661, %v1921
      %v1974 = vadd.f32 %v1662, %v1924
      %v1975 = vadd.f32 %v1663, %v1929
      %v1976 = vadd.f32 %v1664, %v1932
      %v1977 = vadd.f32 %v1665, %v1937
      %v1978 = vadd.f32 %v1666, %v1940
      %v1979 = vadd.f32 %v1667, %v1945
      %v1980 = vadd.f32 %v1668, %v1948
      %v1981 = vadd.f32 %v1669, %v1953
      %v1982 = vadd.f32 %v1670, %v1956
      %v1983 = vadd.f32 %v1671, %v1961
      %v1984 = vadd.f32 %v1672, %v1964
      %v1985 = vld [vmem:[%s165 + $0xc] sm:$0x8]
      %s1986 = scalar_lea.vmem %s1, 64
      %v1987 = vld [vmem:[%s1986] sm:$0xf]
      %v1988 = vld [vmem:[%s1986 + $0x4] sm:$0xf]
      %v1990 = vunpack.c.l.b16 %v1985
      %v1991 = vpack.c.b16 %v1715, %v1990
      %v1992 = vrot.slane %v1991, 3
      %v1993 = vrot.slane %v1734, 3
      %v1994 = vsel %vm836, %v1992, %v1993
      %v1995 = vrot.slane %v1735, 3
      %v1996 = vsel %vm836, %v1993, %v1995
      %v1997 = vrot.slane %v1736, 3
      %v1998 = vsel %vm836, %v1995, %v1997
      %v1999 = vrot.slane %v1737, 3
      %v2000 = vsel %vm836, %v1997, %v1999
      %v2001 = vrot.slane %v1738, 3
      %v2002 = vsel %vm836, %v1999, %v2001
      %v2003 = vrot.slane %v1739, 3
      %v2004 = vsel %vm836, %v2001, %v2003
      %v2005 = vrot.slane %v1740, 3
      %v2006 = vsel %vm836, %v2003, %v2005
      %v2007 = vrot.slane %v1741, 3
      %v2008 = vsel %vm836, %v2005, %v2007
      %v2009 = vrot.slane %v1742, 3
      %v2010 = vsel %vm836, %v2007, %v2009
      %v2013 = vunpack.c.l.b16 %v1987
      %v2014 = vunpack.c.l.b16 %v1988
      %v2015 = vpack.c.b16 %v2014, %v2013
      %v2018 = vsel %vm319, %v1994, 0
      %v2021 = vsel %vm319, %v1996, 0
      %v2024 = vsel %vm319, %v1998, 0
      %v2027 = vsel %vm319, %v2000, 0
      %v2030 = vsel %vm319, %v2002, 0
      %v2033 = vsel %vm319, %v2004, 0
      %v2036 = vsel %vm319, %v2006, 0
      %v2039 = vsel %vm319, %v2008, 0
      %v2042 = vsel %vm319, %v2010, 0
      %2044 = vmatprep.subr.bf16.mxu0 0
      %2045 = vmatpush1.bf16.msra.mxu0 %v2015
      %2046 = vmatprep.subr.bf16.mxu0 0
      %2047 = vmatpush1.bf16.msra.mxu0 0
      %2048 = vmatprep.subr.bf16.mxu0 0
      %2049 = vmatpush1.bf16.msra.mxu0 0
      %2050 = vmatprep.subr.bf16.mxu0 0
      %2051 = vmatpush1.bf16.msra.mxu0 0
      %2052 = vmatprep.subr.bf16.mxu0 0
      %2053 = vmatpush1.bf16.msra.mxu0 0
      %2054 = vmatprep.subr.bf16.mxu0 0
      %2055 = vmatpush1.bf16.msra.mxu0 0
      %2056 = vmatprep.subr.bf16.mxu0 0
      %2057 = vmatpush1.bf16.msra.mxu0 0
      %2058 = vmatprep.subr.bf16.mxu0 0
      %2059 = vmatpush1.bf16.msra.mxu0 0
      %2060 = vmatprep.subr.bf16.mxu0 0
      %2061 = vmatpush1.bf16.msra.mxu0 0
      %2062 = vmatprep.subr.bf16.mxu0 0
      %2063 = vmatpush1.bf16.msra.mxu0 0
      %2064 = vmatprep.subr.bf16.mxu0 0
      %2065 = vmatpush1.bf16.msra.mxu0 0
      %2066 = vmatprep.subr.bf16.mxu0 0
      %2067 = vmatpush1.bf16.msra.mxu0 0
      %2068 = vmatprep.subr.bf16.mxu0 0
      %2069 = vmatpush1.bf16.msra.mxu0 0
      %2070 = vmatprep.subr.bf16.mxu0 0
      %2071 = vmatpush1.bf16.msra.mxu0 0
      %2072 = vmatprep.subr.bf16.mxu0 0
      %2073 = vmatpush1.bf16.msra.mxu0 0
      %2074 = vmatprep.subr.bf16.mxu0 0
      %2075 = vmatpush1.bf16.msra.mxu0 0
      %2076 = vmatprep.mubr.bf16.mxu0 0
      %2077 = vmatmul.mubr.bf16.gmra.mrb[0].mxu0 %v2018
      %v2078 = vpop.f32.mrb[0].mxu0
      %v2079 = vadd.f32 0.0, %v2078
      %v2080 = vpop.f32.mrb[0].mxu0
      %v2081 = vpop.f32.mrb[0].mxu0
      %v2082 = vadd.f32 0.0, %v2081
      %v2083 = vpop.f32.mrb[0].mxu0
      %2084 = vmatprep.mubr.bf16.mxu0 0
      %2085 = vmatmul.mubr.bf16.gmra.mrb[0].mxu0 %v2021
      %v2086 = vpop.f32.mrb[0].mxu0
      %v2087 = vadd.f32 0.0, %v2086
      %v2088 = vpop.f32.mrb[0].mxu0
      %v2089 = vpop.f32.mrb[0].mxu0
      %v2090 = vadd.f32 0.0, %v2089
      %v2091 = vpop.f32.mrb[0].mxu0
      %2092 = vmatprep.mubr.bf16.mxu0 0
      %2093 = vmatmul.mubr.bf16.gmra.mrb[0].mxu0 %v2024
      %v2094 = vpop.f32.mrb[0].mxu0
      %v2095 = vadd.f32 0.0, %v2094
      %v2096 = vpop.f32.mrb[0].mxu0
      %v2097 = vpop.f32.mrb[0].mxu0
      %v2098 = vadd.f32 0.0, %v2097
      %v2099 = vpop.f32.mrb[0].mxu0
      %2100 = vmatprep.mubr.bf16.mxu0 0
      %2101 = vmatmul.mubr.bf16.gmra.mrb[0].mxu0 %v2027
      %v2102 = vpop.f32.mrb[0].mxu0
      %v2103 = vadd.f32 0.0, %v2102
      %v2104 = vpop.f32.mrb[0].mxu0
      %v2105 = vpop.f32.mrb[0].mxu0
      %v2106 = vadd.f32 0.0, %v2105
      %v2107 = vpop.f32.mrb[0].mxu0
      %2108 = vmatprep.mubr.bf16.mxu0 0
      %2109 = vmatmul.mubr.bf16.gmra.mrb[0].mxu0 %v2030
      %v2110 = vpop.f32.mrb[0].mxu0
      %v2111 = vadd.f32 0.0, %v2110
      %v2112 = vpop.f32.mrb[0].mxu0
      %v2113 = vpop.f32.mrb[0].mxu0
      %v2114 = vadd.f32 0.0, %v2113
      %v2115 = vpop.f32.mrb[0].mxu0
      %2116 = vmatprep.mubr.bf16.mxu0 0
      %2117 = vmatmul.mubr.bf16.gmra.mrb[0].mxu0 %v2033
      %v2118 = vpop.f32.mrb[0].mxu0
      %v2119 = vadd.f32 0.0, %v2118
      %v2120 = vpop.f32.mrb[0].mxu0
      %v2121 = vpop.f32.mrb[0].mxu0
      %v2122 = vadd.f32 0.0, %v2121
      %v2123 = vpop.f32.mrb[0].mxu0
      %2124 = vmatprep.mubr.bf16.mxu0 0
      %2125 = vmatmul.mubr.bf16.gmra.mrb[0].mxu0 %v2036
      %v2126 = vpop.f32.mrb[0].mxu0
      %v2127 = vadd.f32 0.0, %v2126
      %v2128 = vpop.f32.mrb[0].mxu0
      %v2129 = vpop.f32.mrb[0].mxu0
      %v2130 = vadd.f32 0.0, %v2129
      %v2131 = vpop.f32.mrb[0].mxu0
      %2132 = vmatprep.mubr.bf16.mxu0 0
      %2133 = vmatmul.mubr.bf16.gmra.mrb[0].mxu0 %v2039
      %v2134 = vpop.f32.mrb[0].mxu0
      %v2135 = vadd.f32 0.0, %v2134
      %v2136 = vpop.f32.mrb[0].mxu0
      %v2137 = vpop.f32.mrb[0].mxu0
      %v2138 = vadd.f32 0.0, %v2137
      %v2139 = vpop.f32.mrb[0].mxu0
      %2140 = vmatprep.mubr.bf16.mxu0 0
      %2141 = vmatmul.mubr.bf16.gmra.mrb[0].mxu0 %v2042
      %v2142 = vpop.f32.mrb[0].mxu0
      %v2143 = vadd.f32 0.0, %v2142
      %v2144 = vpop.f32.mrb[0].mxu0
      %v2145 = vpop.f32.mrb[0].mxu0
      %v2146 = vadd.f32 0.0, %v2145
      %v2147 = vpop.f32.mrb[0].mxu0
      %2148 = vdwg.mxu0
      %v2149 = vadd.f32 %v1967, %v2079
      %v2150 = vadd.f32 %v1968, %v2082
      %v2151 = vadd.f32 %v1969, %v2087
      %v2152 = vadd.f32 %v1970, %v2090
      %v2153 = vadd.f32 %v1971, %v2095
      %v2154 = vadd.f32 %v1972, %v2098
      %v2155 = vadd.f32 %v1973, %v2103
      %v2156 = vadd.f32 %v1974, %v2106
      %v2157 = vadd.f32 %v1975, %v2111
      %v2158 = vadd.f32 %v1976, %v2114
      %v2159 = vadd.f32 %v1977, %v2119
      %v2160 = vadd.f32 %v1978, %v2122
      %v2161 = vadd.f32 %v1979, %v2127
      %v2162 = vadd.f32 %v1980, %v2130
      %v2163 = vadd.f32 %v1981, %v2135
      %v2164 = vadd.f32 %v1982, %v2138
      %v2165 = vadd.f32 %v1983, %v2143
      %v2166 = vadd.f32 %v1984, %v2146
      %v2167 = vld [vmem:[%s2] sm:$0x1]
      %v2168 = vlaneseq
      %v2169 = vshrl.u32 %v2168, 7
      %v2170 = vsub.s32 0, %v2169
      %v2171 = vrot.slane %v2167, %v2170
      %v2172 = vmul.f32 %v2149, %v2171
      %v2173 = vmul.f32 %v2150, %v2171
      %v2174 = vmul.f32 %v2151, %v2171
      %v2175 = vmul.f32 %v2152, %v2171
      %v2176 = vmul.f32 %v2153, %v2171
      %v2177 = vmul.f32 %v2154, %v2171
      %v2178 = vmul.f32 %v2155, %v2171
      %v2179 = vmul.f32 %v2156, %v2171
      %v2180 = vmul.f32 %v2157, %v2171
      %v2181 = vmul.f32 %v2158, %v2171
      %v2182 = vmul.f32 %v2159, %v2171
      %v2183 = vmul.f32 %v2160, %v2171
      %v2184 = vmul.f32 %v2161, %v2171
      %v2185 = vmul.f32 %v2162, %v2171
      %v2186 = vmul.f32 %v2163, %v2171
      %v2187 = vmul.f32 %v2164, %v2171
      %v2188 = vmul.f32 %v2165, %v2171
      %v2189 = vmul.f32 %v2166, %v2171
      %v2190 = vld [vmem:[%s2 + $0x1] sm:$0x1]
      %v2191 = vlaneseq
      %v2192 = vshrl.u32 %v2191, 7
      %v2193 = vsub.s32 0, %v2192
      %v2194 = vrot.slane %v2190, %v2193
      %v2195 = vadd.f32 %v2172, %v2194
      %v2196 = vadd.f32 %v2173, %v2194
      %v2197 = vadd.f32 %v2174, %v2194
      %v2198 = vadd.f32 %v2175, %v2194
      %v2199 = vadd.f32 %v2176, %v2194
      %v2200 = vadd.f32 %v2177, %v2194
      %v2201 = vadd.f32 %v2178, %v2194
      %v2202 = vadd.f32 %v2179, %v2194
      %v2203 = vadd.f32 %v2180, %v2194
      %v2204 = vadd.f32 %v2181, %v2194
      %v2205 = vadd.f32 %v2182, %v2194
      %v2206 = vadd.f32 %v2183, %v2194
      %v2207 = vadd.f32 %v2184, %v2194
      %v2208 = vadd.f32 %v2185, %v2194
      %v2209 = vadd.f32 %v2186, %v2194
      %v2210 = vadd.f32 %v2187, %v2194
      %v2211 = vadd.f32 %v2188, %v2194
      %v2212 = vadd.f32 %v2189, %v2194
      %v2213 = vmax.f32 %v2195, 0.0
      %v2214 = vmax.f32 %v2196, 0.0
      %v2215 = vmax.f32 %v2197, 0.0
      %v2216 = vmax.f32 %v2198, 0.0
      %v2217 = vmax.f32 %v2199, 0.0
      %v2218 = vmax.f32 %v2200, 0.0
      %v2219 = vmax.f32 %v2201, 0.0
      %v2220 = vmax.f32 %v2202, 0.0
      %v2221 = vmax.f32 %v2203, 0.0
      %v2222 = vmax.f32 %v2204, 0.0
      %v2223 = vmax.f32 %v2205, 0.0
      %v2224 = vmax.f32 %v2206, 0.0
      %v2225 = vmax.f32 %v2207, 0.0
      %v2226 = vmax.f32 %v2208, 0.0
      %v2227 = vmax.f32 %v2209, 0.0
      %v2228 = vmax.f32 %v2210, 0.0
      %v2229 = vmax.f32 %v2211, 0.0
      %v2230 = vmax.f32 %v2212, 0.0
      %vm2231 = vcmask 261120
      %2232 = vst.msk [vmem:[%s170] sm:$0xff] %vm2231, %v2213
      %2233 = vst.msk [vmem:[%s170 + $0x8] sm:$0xff] %vm2231, %v2214
      %2234 = vst.msk [vmem:[%s170 + $0x10] sm:$0xff] %vm2231, %v2215
      %2235 = vst.msk [vmem:[%s170 + $0x18] sm:$0xff] %vm2231, %v2216
      %2236 = vst.msk [vmem:[%s170 + $0x20] sm:$0xff] %vm2231, %v2217
      %2237 = vst.msk [vmem:[%s170 + $0x28] sm:$0xff] %vm2231, %v2218
      %2238 = vst.msk [vmem:[%s170 + $0x30] sm:$0xff] %vm2231, %v2219
      %2239 = vst.msk [vmem:[%s170 + $0x38] sm:$0xff] %vm2231, %v2220
      %2240 = vst.msk [vmem:[%s170 + $0x40] sm:$0xff] %vm2231, %v2221
      %2241 = vst.msk [vmem:[%s170 + $0x48] sm:$0xff] %vm2231, %v2222
      %2242 = vst.msk [vmem:[%s170 + $0x50] sm:$0xff] %vm2231, %v2223
      %2243 = vst.msk [vmem:[%s170 + $0x58] sm:$0xff] %vm2231, %v2224
      %2244 = vst.msk [vmem:[%s170 + $0x60] sm:$0xff] %vm2231, %v2225
      %2245 = vst.msk [vmem:[%s170 + $0x68] sm:$0xff] %vm2231, %v2226
      %2246 = vst.msk [vmem:[%s170 + $0x70] sm:$0xff] %vm2231, %v2227
      %2247 = vst.msk [vmem:[%s170 + $0x78] sm:$0xff] %vm2231, %v2228
      %2248 = vst.msk [vmem:[%s170 + $0x80] sm:$0xff] %vm2231, %v2229
      %vm2249 = vcmask 257024
      %2250 = vst.msk [vmem:[%s170 + $0x88] sm:$0xf] %vm2249, %v2230
      %p2251 = scmp.lt.s32.totalorder %s14, 1
      %s2252 = scalar_select %p2251, %s14, 1
      %s2253 = smul.addr %s2252, 18
      %s2254 = smul.addr %s2253, 8
      %s2255 = scalar_lea.vmem %s3, %s2254
      // Predicated region
      $region33: #{tpu_custom_call.1} parent=31 // pred_check
        %p2256 = pneg %p100
      $region34: #{tpu_custom_call.1} parent=31 // pred_check_branch
        %2258 = sbr.rel (%p2256) target = $region36
      $region35: #{tpu_custom_call.1} parent=31 // pred_region
        _
      $region36: #{tpu_custom_call.1} parent=31 // pred_fallthru
        _
    $region32: #{tpu_custom_call.1} parent=5 // pred_fallthru
      _
    %p2259 = scmp.le.s32.totalorder 2, %s9
    // Predicated region
    $region37: #{tpu_custom_call.1} parent=5 // pred_check
      %p2260 = pneg %p2259
    $region38: #{tpu_custom_call.1} parent=5 // pred_check_branch
      %2262 = sbr.rel (%p2260) target = $region40
    $region39: #{tpu_custom_call.1} parent=5 // pred_region
      %s2263 = ssub.s32 %s9, 2
      // Predicated region
      $region41: #{tpu_custom_call.1} parent=39 // pred_check
        %p2264 = pneg %p106
      $region42: #{tpu_custom_call.1} parent=39 // pred_check_branch
        %2266 = sbr.rel (%p2264) target = $region44
      $region43: #{tpu_custom_call.1} parent=39 // pred_region
        %p2267 = scmp.lt.s32.totalorder %s15, 1
        %s2268 = scalar_select %p2267, %s15, 1
        %s2269 = smul.addr %s2268, 18
        %s2270 = smul.addr %s2269, 8
        %s2271 = scalar_lea.vmem %s3, %s2270
      $region44: #{tpu_custom_call.1} parent=39 // pred_fallthru
        _
    $region40: #{tpu_custom_call.1} parent=5 // pred_fallthru
      _
  $region6: #{tpu_custom_call.1} parent=0 // loop_footer
    %s13 = sadd.s32 1, %s9
  $region7: #{tpu_custom_call.1} parent=0 // loop_footer_branch
    %8 = sbr.rel target = $region3
  $region8: #{tpu_custom_call.1} parent=0 // loop_exit
    _

</llo_original>
